<compile_context>
chip_gen: v7x
topology: tpu7x:2x2x1
jax: 0.10.0
libtpu: 0.0.40
codegen_flags: <defaults>
</compile_context>

<pallas_src>
import jax
import jax.numpy as jnp
from jax.experimental import pallas as pl
from jax.experimental.pallas import tpu as pltpu

STATE_DIM = 9
ACTION_DIM = 2
H1 = 400                 # true feature counts (LayerNorm divisors)
H2 = 300
H1_PAD = 512             # lane-aligned storage widths (multiples of 128)
H2_PAD = 384
OUT_PAD = 128            # lane-dense output width (>= ACTION_DIM)
LN_EPS = 1e-5            # PyTorch nn.LayerNorm default
MAX_TILE_B = 256         # 256-row tiles fill v6e/v7x MXU rows; fine on v5e too
INV_H1 = 1.0 / H1
INV_H2 = 1.0 / H2


def _layer_norm_fused(x, gamma, beta, inv_n):
    """LayerNorm with fused statistics (sum & sum(x*x) in one pass).

    inv_n must be 1 / (true feature count); padded lanes of x are exactly zero
    and gamma/beta are zero-padded, so padded lanes contribute nothing and stay
    zero in the output.
    """
    s = jnp.sum(x, axis=-1, keepdims=True)
    s2 = jnp.sum(x * x, axis=-1, keepdims=True)
    mu = s * inv_n
    var = s2 * inv_n - mu * mu
    inv = jax.lax.rsqrt(var + LN_EPS)
    return (x - mu) * inv * gamma + beta


def actor_kernel(state_ref,
                 w1_ref, p1_ref,      # w1 bf16 (9, 512);   p1 f32 (3, 512) = [b1; g1; beta1]
                 w2_ref, p2_ref,      # w2 bf16 (512, 384); p2 f32 (3, 384) = [b2; g2; beta2]
                 w3_ref, b3_ref,      # w3 bf16 (384, 128); b3 f32 (1, 128)
                 out_ref):            # out f32 (TILE, 128)
    x = state_ref[...]                                               # (TB, 9) f32

    # linear1 -> ln1 -> relu   (bf16 dot inputs, f32 accumulate)
    h = jnp.dot(x.astype(jnp.bfloat16), w1_ref[...],
                preferred_element_type=jnp.float32)
    h = h + p1_ref[0:1, :]
    h = _layer_norm_fused(h, p1_ref[1:2, :], p1_ref[2:3, :], INV_H1)
    h = jnp.maximum(h, 0.0)                                          # (TB, 512) f32

    # linear2 -> ln2 -> relu
    h = jnp.dot(h.astype(jnp.bfloat16), w2_ref[...],
                preferred_element_type=jnp.float32)
    h = h + p2_ref[0:1, :]
    h = _layer_norm_fused(h, p2_ref[1:2, :], p2_ref[2:3, :], INV_H2)
    h = jnp.maximum(h, 0.0)                                          # (TB, 384) f32

    # linear3 -> tanh   (lane-dense N = 128; cols >= ACTION_DIM are zero -> tanh(0)=0)
    h = jnp.dot(h.astype(jnp.bfloat16), w3_ref[...],
                preferred_element_type=jnp.float32) + b3_ref[...]
    out_ref[...] = jnp.tanh(h)                                       # (TB, 128)


def actor_forward(state, params):
    """Run the DDPG Actor forward pass as one Pallas call, tiled over batch."""
    batch = state.shape[0]

    if batch <= MAX_TILE_B:
        # Small batch: one tile, no batch grid -> no per-step overhead.
        tile_b = max(8, ((batch + 7) // 8) * 8)
    else:
        # Large batch: 256-row tiles (>= 2 tiles -> both TCs used on v7x).
        tile_b = MAX_TILE_B

    num_tiles = pl.cdiv(batch, tile_b)
    padded = num_tiles * tile_b
    if padded != batch:
        state = jnp.pad(state, ((0, padded - batch), (0, 0)))

    out = pl.pallas_call(
        actor_kernel,
        out_shape=jax.ShapeDtypeStruct((padded, OUT_PAD), jnp.float32),
        grid=(num_tiles,),
        in_specs=[
            pl.BlockSpec((tile_b, STATE_DIM), lambda i: (i, 0)),    # state: per-tile
            pl.BlockSpec((STATE_DIM, H1_PAD), lambda i: (0, 0)),    # weights: VMEM-resident
            pl.BlockSpec((3, H1_PAD), lambda i: (0, 0)),
            pl.BlockSpec((H1_PAD, H2_PAD), lambda i: (0, 0)),
            pl.BlockSpec((3, H2_PAD), lambda i: (0, 0)),
            pl.BlockSpec((H2_PAD, OUT_PAD), lambda i: (0, 0)),
            pl.BlockSpec((1, OUT_PAD), lambda i: (0, 0)),
        ],
        out_specs=pl.BlockSpec((tile_b, OUT_PAD), lambda i: (i, 0)),
        compiler_params=pltpu.CompilerParams(
            dimension_semantics=("parallel",)),                     # shards tiles on v7x (2 TCs)
    )(state,
      params["w1"], params["p1"],
      params["w2"], params["p2"],
      params["w3"], params["b3"])
    return out[:batch, :ACTION_DIM]


def init_params(key):
    """Deterministic synthetic init mirroring the PyTorch module's shapes.

    linear1/linear2: uniform(-1/sqrt(fan_in), 1/sqrt(fan_in)) (PyTorch default)
    linear3 weight:  uniform(-init_w, init_w), init_w = 0.003
    linear3 bias:    PyTorch default uniform(-1/sqrt(H2), 1/sqrt(H2))
    LayerNorm:       gamma = 1, beta = 0
    Storage: weights (in_features, out_features) bf16, zero-padded to lane-aligned
    widths (H1->512, H2->384, ACTION_DIM->128); per-feature params packed as
    (3, H_PAD) f32 with row0 = bias, row1 = gamma, row2 = beta, padding = 0.
    """
    init_w = 0.003
    ks = jax.random.split(key, 6)

    def u(k, shape, bound):
        return jax.random.uniform(k, shape, jnp.float32, -bound, bound)

    bound1 = 1.0 / jnp.sqrt(STATE_DIM)
    bound2 = 1.0 / jnp.sqrt(H1)
    bound3 = 1.0 / jnp.sqrt(H2)

    def pad_cols(x, width):
        return jnp.pad(x, ((0, 0), (0, width - x.shape[1])))

    def pad_rows_cols(x, rows, cols):
        return jnp.pad(x, ((0, rows - x.shape[0]), (0, cols - x.shape[1])))

    w1 = pad_cols(u(ks[0], (STATE_DIM, H1), bound1), H1_PAD)
    b1 = pad_cols(u(ks[1], (1, H1), bound1), H1_PAD)
    g1 = pad_cols(jnp.ones((1, H1), jnp.float32), H1_PAD)
    w2 = pad_rows_cols(u(ks[2], (H1, H2), bound2), H1_PAD, H2_PAD)
    b2 = pad_cols(u(ks[3], (1, H2), bound2), H2_PAD)
    g2 = pad_cols(jnp.ones((1, H2), jnp.float32), H2_PAD)
    w3 = pad_rows_cols(u(ks[4], (H2, ACTION_DIM), init_w), H2_PAD, OUT_PAD)
    b3 = pad_cols(u(ks[5], (1, ACTION_DIM), bound3), OUT_PAD)

    return {
        "w1": w1.astype(jnp.bfloat16),
        "p1": jnp.concatenate([b1, g1, jnp.zeros((1, H1_PAD), jnp.float32)], axis=0),
        "w2": w2.astype(jnp.bfloat16),
        "p2": jnp.concatenate([b2, g2, jnp.zeros((1, H2_PAD), jnp.float32)], axis=0),
        "w3": w3.astype(jnp.bfloat16),
        "b3": b3,
    }


def actor_reference(state, p):
    """Pure-JAX reference with identical numerics (bf16 dot inputs, f32 accum,
    padded lanes, true-feature-count LayerNorm divisors)."""
    h = jnp.dot(state.astype(jnp.bfloat16), p["w1"],
                preferred_element_type=jnp.float32) + p["p1"][0:1, :]
    h = _layer_norm_fused(h, p["p1"][1:2, :], p["p1"][2:3, :], INV_H1)
    h = jnp.maximum(h, 0.0)
    h = jnp.dot(h.astype(jnp.bfloat16), p["w2"],
                preferred_element_type=jnp.float32) + p["p2"][0:1, :]
    h = _layer_norm_fused(h, p["p2"][1:2, :], p["p2"][2:3, :], INV_H2)
    h = jnp.maximum(h, 0.0)
    h = jnp.dot(h.astype(jnp.bfloat16), p["w3"],
                preferred_element_type=jnp.float32) + p["b3"]
    return jnp.tanh(h)[:, :ACTION_DIM]


if __name__ == "__main__":
    key = jax.random.PRNGKey(0)
    pkey, skey1, skey2 = jax.random.split(key, 3)

    params = init_params(pkey)

    # Case 1: small batch -> single tile, no batch grid.
    batch_small = 16
    state_small = jax.random.normal(skey1, (batch_small, STATE_DIM), jnp.float32)
    out_small = jax.block_until_ready(actor_forward(state_small, params))
    ref_small = actor_reference(state_small, params)
    assert out_small.shape == (batch_small, ACTION_DIM)
    assert jnp.all(jnp.abs(out_small) <= 1.0)          # tanh output range
    assert jnp.allclose(out_small, ref_small, atol=2e-3, rtol=2e-3)

    # Case 2: larger batch -> two 256-row tiles (exercises grid + resident weights).
    batch_large = 300
    state_large = jax.random.normal(skey2, (batch_large, STATE_DIM), jnp.float32)
    out_large = jax.block_until_ready(actor_forward(state_large, params))
    ref_large = actor_reference(state_large, params)
    assert out_large.shape == (batch_large, ACTION_DIM)
    assert jnp.all(jnp.abs(out_large) <= 1.0)
    assert jnp.allclose(out_large, ref_large, atol=2e-3, rtol=2e-3)

    print("KERNEL_OK")
</pallas_src>

<mosaic_0001>
module attributes {stable_mosaic.version = 11 : i64} {
  func.func @actor_kernel(%arg0: i32, %arg1: memref<16x9xf32, #tpu.memory_space<vmem>>, %arg2: memref<9x512xbf16, #tpu.memory_space<vmem>>, %arg3: memref<3x512xf32, #tpu.memory_space<vmem>>, %arg4: memref<512x384xbf16, #tpu.memory_space<vmem>>, %arg5: memref<3x384xf32, #tpu.memory_space<vmem>>, %arg6: memref<384x128xbf16, #tpu.memory_space<vmem>>, %arg7: memref<1x128xf32, #tpu.memory_space<vmem>>, %arg8: memref<16x128xf32, #tpu.memory_space<vmem>>) attributes {dimension_semantics = [#tpu.dimension_semantics<parallel>], iteration_bounds = array<i64: 1>, scalar_prefetch = 0 : i64, scratch_operands = 0 : i64, tpu.core_type = #tpu.core_type<tc>, window_params = [{transform_indices = @transform_0, window_bounds = array<i64: 16, 9>}, {pipeline_mode = #tpu.pipeline_mode<synchronous>, transform_indices = @transform_1, window_bounds = array<i64: 9, 512>}, {pipeline_mode = #tpu.pipeline_mode<synchronous>, transform_indices = @transform_2, window_bounds = array<i64: 3, 512>}, {pipeline_mode = #tpu.pipeline_mode<synchronous>, transform_indices = @transform_3, window_bounds = array<i64: 512, 384>}, {pipeline_mode = #tpu.pipeline_mode<synchronous>, transform_indices = @transform_4, window_bounds = array<i64: 3, 384>}, {pipeline_mode = #tpu.pipeline_mode<synchronous>, transform_indices = @transform_5, window_bounds = array<i64: 384, 128>}, {pipeline_mode = #tpu.pipeline_mode<synchronous>, transform_indices = @transform_6, window_bounds = array<i64: 1, 128>}, {transform_indices = @transform_7, window_bounds = array<i64: 16, 128>}]} {
    %c0 = arith.constant 0 : index
    %c0_0 = arith.constant 0 : index
    %0 = vector.load %arg1[%c0, %c0_0] : memref<16x9xf32, #tpu.memory_space<vmem>>, vector<16x9xf32>
    %1 = arith.truncf %0 : vector<16x9xf32> to vector<16x9xbf16>
    %c0_1 = arith.constant 0 : index
    %c0_2 = arith.constant 0 : index
    %2 = vector.load %arg2[%c0_1, %c0_2] : memref<9x512xbf16, #tpu.memory_space<vmem>>, vector<9x512xbf16>
    %cst = arith.constant dense<0.000000e+00> : vector<16x512xf32>
    %3 = tpu.matmul %1, %2, %cst {dimension_numbers = #tpu.dot_dimension_numbers<[1], [0], [0], [1], [0, 0, 1, 1], [], []>} : vector<16x9xbf16>, vector<9x512xbf16>, vector<16x512xf32> -> vector<16x512xf32>
    %c0_3 = arith.constant 0 : index
    %c0_4 = arith.constant 0 : index
    %4 = vector.load %arg3[%c0_3, %c0_4] : memref<3x512xf32, #tpu.memory_space<vmem>>, vector<1x512xf32>
    %5 = vector.broadcast %4 : vector<1x512xf32> to vector<16x512xf32>
    %6 = arith.addf %3, %5 : vector<16x512xf32>
    %c1 = arith.constant 1 : index
    %c0_5 = arith.constant 0 : index
    %7 = vector.load %arg3[%c1, %c0_5] : memref<3x512xf32, #tpu.memory_space<vmem>>, vector<1x512xf32>
    %c2 = arith.constant 2 : index
    %c0_6 = arith.constant 0 : index
    %8 = vector.load %arg3[%c2, %c0_6] : memref<3x512xf32, #tpu.memory_space<vmem>>, vector<1x512xf32>
    %cst_7 = arith.constant dense<0.000000e+00> : vector<16xf32>
    %9 = vector.multi_reduction <add>, %6, %cst_7 [1] : vector<16x512xf32> to vector<16xf32>
    %10 = vector.shape_cast %9 : vector<16xf32> to vector<16x1xf32>
    %11 = arith.mulf %6, %6 : vector<16x512xf32>
    %cst_8 = arith.constant dense<0.000000e+00> : vector<16xf32>
    %12 = vector.multi_reduction <add>, %11, %cst_8 [1] : vector<16x512xf32> to vector<16xf32>
    %13 = vector.shape_cast %12 : vector<16xf32> to vector<16x1xf32>
    %cst_9 = arith.constant 2.500000e-03 : f32
    %14 = vector.broadcast %cst_9 : f32 to vector<16x1xf32>
    %15 = arith.mulf %10, %14 : vector<16x1xf32>
    %cst_10 = arith.constant 2.500000e-03 : f32
    %16 = vector.broadcast %cst_10 : f32 to vector<16x1xf32>
    %17 = arith.mulf %13, %16 : vector<16x1xf32>
    %18 = arith.mulf %15, %15 : vector<16x1xf32>
    %19 = arith.subf %17, %18 : vector<16x1xf32>
    %cst_11 = arith.constant 9.99999974E-6 : f32
    %20 = vector.broadcast %cst_11 : f32 to vector<16x1xf32>
    %21 = arith.addf %19, %20 : vector<16x1xf32>
    %22 = math.rsqrt %21 : vector<16x1xf32>
    %23 = vector.broadcast %15 : vector<16x1xf32> to vector<16x512xf32>
    %24 = arith.subf %6, %23 : vector<16x512xf32>
    %25 = vector.broadcast %22 : vector<16x1xf32> to vector<16x512xf32>
    %26 = arith.mulf %24, %25 : vector<16x512xf32>
    %27 = vector.broadcast %7 : vector<1x512xf32> to vector<16x512xf32>
    %28 = arith.mulf %26, %27 : vector<16x512xf32>
    %29 = vector.broadcast %8 : vector<1x512xf32> to vector<16x512xf32>
    %30 = arith.addf %28, %29 : vector<16x512xf32>
    %cst_12 = arith.constant 0.000000e+00 : f32
    %31 = vector.broadcast %cst_12 : f32 to vector<16x512xf32>
    %32 = arith.maximumf %30, %31 : vector<16x512xf32>
    %33 = arith.truncf %32 : vector<16x512xf32> to vector<16x512xbf16>
    %c0_13 = arith.constant 0 : index
    %c0_14 = arith.constant 0 : index
    %34 = vector.load %arg4[%c0_13, %c0_14] : memref<512x384xbf16, #tpu.memory_space<vmem>>, vector<512x384xbf16>
    %cst_15 = arith.constant dense<0.000000e+00> : vector<16x384xf32>
    %35 = tpu.matmul %33, %34, %cst_15 {dimension_numbers = #tpu.dot_dimension_numbers<[1], [0], [0], [1], [0, 0, 1, 1], [], []>} : vector<16x512xbf16>, vector<512x384xbf16>, vector<16x384xf32> -> vector<16x384xf32>
    %c0_16 = arith.constant 0 : index
    %c0_17 = arith.constant 0 : index
    %36 = vector.load %arg5[%c0_16, %c0_17] : memref<3x384xf32, #tpu.memory_space<vmem>>, vector<1x384xf32>
    %37 = vector.broadcast %36 : vector<1x384xf32> to vector<16x384xf32>
    %38 = arith.addf %35, %37 : vector<16x384xf32>
    %c1_18 = arith.constant 1 : index
    %c0_19 = arith.constant 0 : index
    %39 = vector.load %arg5[%c1_18, %c0_19] : memref<3x384xf32, #tpu.memory_space<vmem>>, vector<1x384xf32>
    %c2_20 = arith.constant 2 : index
    %c0_21 = arith.constant 0 : index
    %40 = vector.load %arg5[%c2_20, %c0_21] : memref<3x384xf32, #tpu.memory_space<vmem>>, vector<1x384xf32>
    %cst_22 = arith.constant dense<0.000000e+00> : vector<16xf32>
    %41 = vector.multi_reduction <add>, %38, %cst_22 [1] : vector<16x384xf32> to vector<16xf32>
    %42 = vector.shape_cast %41 : vector<16xf32> to vector<16x1xf32>
    %43 = arith.mulf %38, %38 : vector<16x384xf32>
    %cst_23 = arith.constant dense<0.000000e+00> : vector<16xf32>
    %44 = vector.multi_reduction <add>, %43, %cst_23 [1] : vector<16x384xf32> to vector<16xf32>
    %45 = vector.shape_cast %44 : vector<16xf32> to vector<16x1xf32>
    %cst_24 = arith.constant 0.00333333341 : f32
    %46 = vector.broadcast %cst_24 : f32 to vector<16x1xf32>
    %47 = arith.mulf %42, %46 : vector<16x1xf32>
    %cst_25 = arith.constant 0.00333333341 : f32
    %48 = vector.broadcast %cst_25 : f32 to vector<16x1xf32>
    %49 = arith.mulf %45, %48 : vector<16x1xf32>
    %50 = arith.mulf %47, %47 : vector<16x1xf32>
    %51 = arith.subf %49, %50 : vector<16x1xf32>
    %cst_26 = arith.constant 9.99999974E-6 : f32
    %52 = vector.broadcast %cst_26 : f32 to vector<16x1xf32>
    %53 = arith.addf %51, %52 : vector<16x1xf32>
    %54 = math.rsqrt %53 : vector<16x1xf32>
    %55 = vector.broadcast %47 : vector<16x1xf32> to vector<16x384xf32>
    %56 = arith.subf %38, %55 : vector<16x384xf32>
    %57 = vector.broadcast %54 : vector<16x1xf32> to vector<16x384xf32>
    %58 = arith.mulf %56, %57 : vector<16x384xf32>
    %59 = vector.broadcast %39 : vector<1x384xf32> to vector<16x384xf32>
    %60 = arith.mulf %58, %59 : vector<16x384xf32>
    %61 = vector.broadcast %40 : vector<1x384xf32> to vector<16x384xf32>
    %62 = arith.addf %60, %61 : vector<16x384xf32>
    %cst_27 = arith.constant 0.000000e+00 : f32
    %63 = vector.broadcast %cst_27 : f32 to vector<16x384xf32>
    %64 = arith.maximumf %62, %63 : vector<16x384xf32>
    %65 = arith.truncf %64 : vector<16x384xf32> to vector<16x384xbf16>
    %c0_28 = arith.constant 0 : index
    %c0_29 = arith.constant 0 : index
    %66 = vector.load %arg6[%c0_28, %c0_29] : memref<384x128xbf16, #tpu.memory_space<vmem>>, vector<384x128xbf16>
    %cst_30 = arith.constant dense<0.000000e+00> : vector<16x128xf32>
    %67 = tpu.matmul %65, %66, %cst_30 {dimension_numbers = #tpu.dot_dimension_numbers<[1], [0], [0], [1], [0, 0, 1, 1], [], []>} : vector<16x384xbf16>, vector<384x128xbf16>, vector<16x128xf32> -> vector<16x128xf32>
    %c0_31 = arith.constant 0 : index
    %c0_32 = arith.constant 0 : index
    %68 = vector.load %arg7[%c0_31, %c0_32] : memref<1x128xf32, #tpu.memory_space<vmem>>, vector<1x128xf32>
    %69 = vector.broadcast %68 : vector<1x128xf32> to vector<16x128xf32>
    %70 = arith.addf %67, %69 : vector<16x128xf32>
    %71 = math.tanh %70 : vector<16x128xf32>
    %c0_33 = arith.constant 0 : index
    %c0_34 = arith.constant 0 : index
    %72 = vector.load %arg8[%c0_33, %c0_34] : memref<16x128xf32, #tpu.memory_space<vmem>>, vector<16x128xf32>
    tpu.vector_store %arg8[%c0_33, %c0_34], %71 {strides = array<i32>} : memref<16x128xf32, #tpu.memory_space<vmem>>, vector<16x128xf32>,
    return
  }
  func.func @transform_0(%arg0: i32) -> (i32, i32) {
    %c0_i32 = arith.constant 0 : i32
    %c0_i32_0 = arith.constant 0 : i32
    return %arg0, %c0_i32 : i32, i32
  }
  func.func @transform_1(%arg0: i32) -> (i32, i32) {
    %c0_i32 = arith.constant 0 : i32
    %c0_i32_0 = arith.constant 0 : i32
    %c0_i32_1 = arith.constant 0 : i32
    return %c0_i32, %c0_i32_0 : i32, i32
  }
  func.func @transform_2(%arg0: i32) -> (i32, i32) {
    %c0_i32 = arith.constant 0 : i32
    %c0_i32_0 = arith.constant 0 : i32
    %c0_i32_1 = arith.constant 0 : i32
    return %c0_i32, %c0_i32_0 : i32, i32
  }
  func.func @transform_3(%arg0: i32) -> (i32, i32) {
    %c0_i32 = arith.constant 0 : i32
    %c0_i32_0 = arith.constant 0 : i32
    %c0_i32_1 = arith.constant 0 : i32
    return %c0_i32, %c0_i32_0 : i32, i32
  }
  func.func @transform_4(%arg0: i32) -> (i32, i32) {
    %c0_i32 = arith.constant 0 : i32
    %c0_i32_0 = arith.constant 0 : i32
    %c0_i32_1 = arith.constant 0 : i32
    return %c0_i32, %c0_i32_0 : i32, i32
  }
  func.func @transform_5(%arg0: i32) -> (i32, i32) {
    %c0_i32 = arith.constant 0 : i32
    %c0_i32_0 = arith.constant 0 : i32
    %c0_i32_1 = arith.constant 0 : i32
    return %c0_i32, %c0_i32_0 : i32, i32
  }
  func.func @transform_6(%arg0: i32) -> (i32, i32) {
    %c0_i32 = arith.constant 0 : i32
    %c0_i32_0 = arith.constant 0 : i32
    %c0_i32_1 = arith.constant 0 : i32
    return %c0_i32, %c0_i32_0 : i32, i32
  }
  func.func @transform_7(%arg0: i32) -> (i32, i32) {
    %c0_i32 = arith.constant 0 : i32
    %c0_i32_0 = arith.constant 0 : i32
    return %arg0, %c0_i32 : i32, i32
  }
}

</mosaic_0001>

<llo_original>
// kernel: tpu_custom_call.1
$region0: #{tpu_custom_call.1}
  #allocation0 [shape = 'u32[]', space=smem, size = 0x4, offset = 0x4, fixed_abs, tag = 'smem constant byte address 0x4 - core index']
  #allocation1 [shape = 'u32[144,128]{1,0:T(1,128)}', space=vmem, size = 0x12000, scoped, tag = 'internal scratch']
  %s0 = inlined_call_operand.hbm [shape: f32[16,9], index: 0, kind: input, shape index: {}]
  %s1 = inlined_call_operand.hbm [shape: bf16[9,512], index: 1, kind: input, shape index: {}]
  %s2 = inlined_call_operand.hbm [shape: f32[3,512], index: 2, kind: input, shape index: {}]
  %s3 = inlined_call_operand.hbm [shape: bf16[512,384], index: 3, kind: input, shape index: {}]
  %s4 = inlined_call_operand.vmem [shape: f32[3,384], index: 4, kind: input, shape index: {}]
  %s5 = inlined_call_operand.hbm [shape: bf16[384,128], index: 5, kind: input, shape index: {}]
  %s6 = inlined_call_operand.vmem [shape: f32[1,128], index: 6, kind: input, shape index: {}]
  %s7 = inlined_call_operand.hbm [shape: f32[16,128], index: 7, kind: output, shape index: {}]
  %s8 = sld [smem:[#allocation0]]
  $region58: #{tpu_custom_call.1} parent=0
    _
  %s10 = ssub.s32 1, %s8
  %s11 = scalar_select 0, %s10, %s8
  $region1: #{tpu_custom_call.1} parent=0
    #allocation2 [shape = 'u8[8192]{0}', space=vmem, size = 0x2000, scoped, tag = 'input window, operand 0, single buffered']
    #allocation3 [shape = 's32[1]{0}', space=sflag, size = 0x4, scoped, tag = 'scoped memory for tpu_custom_call.1']
    #allocation4 [shape = 's32[1]{0}', space=sflag, size = 0x4, scoped, tag = 'scoped memory for tpu_custom_call.1']
    #allocation5 [shape = 'u8[16384]{0}', space=vmem, size = 0x4000, scoped, tag = 'input window, operand 1, single buffered']
    #allocation6 [shape = 's32[1]{0}', space=sflag, size = 0x4, scoped, tag = 'scoped memory for tpu_custom_call.1']
    #allocation7 [shape = 'u8[8192]{0}', space=vmem, size = 0x2000, scoped, tag = 'input window, operand 2, single buffered']
    #allocation8 [shape = 'u8[393216]{0}', space=vmem, size = 0x60000, scoped, tag = 'input window, operand 3, single buffered']
    #allocation9 [shape = 's32[1]{0}', space=sflag, size = 0x4, scoped, tag = 'scoped memory for tpu_custom_call.1']
    #allocation10 [shape = 'u8[98304]{0}', space=vmem, size = 0x18000, scoped, tag = 'input window, operand 5, single buffered']
    #allocation11 [shape = 'u8[8192]{0}', space=vmem, size = 0x2000, scoped, tag = 'output window, operand 0, single buffered']
    %12 = vsyncpa [#allocation3], 0
    %13 = vsyncpa [#allocation6], 0
    %14 = vsyncpa [#allocation9], 0
    %15 = vsyncpa [#allocation4], 0
    // Predicated region
    $region2: #{tpu_custom_call.1} parent=1 // pred_check
      _
    $region3: #{tpu_custom_call.1} parent=1 // pred_check_branch
      %17 = sbr.rel (0) target = $region5
    $region4: #{tpu_custom_call.1} parent=1 // pred_region
      %s19 = ssub.s32 256, 256
      %20 = vsyncadd [#allocation3], %s19
      %s21 = sshll.u32 [#allocation2], 4
      %s22 = int_to_ptr.vmem [resolvable:$true] %s21
      %27 = dma.hbm_to_vmem [thread:$0]  %s0, 256, %s22, [#allocation3], 128, 128, 8
    $region5: #{tpu_custom_call.1} parent=1 // pred_fallthru
      _
    // Predicated region
    $region6: #{tpu_custom_call.1} parent=1 // pred_check
      _
    $region7: #{tpu_custom_call.1} parent=1 // pred_check_branch
      %29 = sbr.rel (0) target = $region9
    $region8: #{tpu_custom_call.1} parent=1 // pred_region
      %s31 = ssub.s32 512, 512
      %32 = vsyncadd [#allocation6], %s31
      %s33 = sshll.u32 [#allocation5], 4
      %s34 = int_to_ptr.vmem [resolvable:$true] %s33
      %39 = dma.hbm_to_vmem [thread:$0]  %s1, 512, %s34, [#allocation6], 256, 256, 16
    $region9: #{tpu_custom_call.1} parent=1 // pred_fallthru
      _
    // Predicated region
    $region10: #{tpu_custom_call.1} parent=1 // pred_check
      _
    $region11: #{tpu_custom_call.1} parent=1 // pred_check_branch
      %41 = sbr.rel (0) target = $region13
    $region12: #{tpu_custom_call.1} parent=1 // pred_region
      %s43 = ssub.s32 256, 256
      %44 = vsyncadd [#allocation6], %s43
      %s46 = sshll.u32 [#allocation7], 4
      %s47 = int_to_ptr.vmem [resolvable:$true] %s46
      %49 = dma.hbm_to_vmem [thread:$0]  %s2, 256, %s47, [#allocation6]
    $region13: #{tpu_custom_call.1} parent=1 // pred_fallthru
      _
    // Predicated region
    $region14: #{tpu_custom_call.1} parent=1 // pred_check
      _
    $region15: #{tpu_custom_call.1} parent=1 // pred_check_branch
      %51 = sbr.rel (0) target = $region17
    $region16: #{tpu_custom_call.1} parent=1 // pred_region
      %s53 = ssub.s32 12288, 12288
      %54 = vsyncadd [#allocation9], %s53
      %s55 = sshll.u32 [#allocation8], 4
      %s56 = int_to_ptr.vmem [resolvable:$true] %s55
      %61 = dma.hbm_to_vmem [thread:$0]  %s3, 12288, %s56, [#allocation9], 192, 192, 12
    $region17: #{tpu_custom_call.1} parent=1 // pred_fallthru
      _
    // Predicated region
    $region18: #{tpu_custom_call.1} parent=1 // pred_check
      _
    $region19: #{tpu_custom_call.1} parent=1 // pred_check_branch
      %63 = sbr.rel (0) target = $region21
    $region20: #{tpu_custom_call.1} parent=1 // pred_region
      _
    $region21: #{tpu_custom_call.1} parent=1 // pred_fallthru
      _
    // Predicated region
    $region22: #{tpu_custom_call.1} parent=1 // pred_check
      _
    $region23: #{tpu_custom_call.1} parent=1 // pred_check_branch
      %65 = sbr.rel (0) target = $region25
    $region24: #{tpu_custom_call.1} parent=1 // pred_region
      %s67 = ssub.s32 3072, 3072
      %68 = vsyncadd [#allocation9], %s67
      %s69 = sshll.u32 [#allocation10], 4
      %s70 = int_to_ptr.vmem [resolvable:$true] %s69
      %75 = dma.hbm_to_vmem [thread:$0]  %s5, 3072, %s70, [#allocation9], 64, 64, 4
    $region25: #{tpu_custom_call.1} parent=1 // pred_fallthru
      _
    // Predicated region
    $region26: #{tpu_custom_call.1} parent=1 // pred_check
      _
    $region27: #{tpu_custom_call.1} parent=1 // pred_check_branch
      %77 = sbr.rel (0) target = $region29
    $region28: #{tpu_custom_call.1} parent=1 // pred_region
      _
    $region29: #{tpu_custom_call.1} parent=1 // pred_fallthru
      _
    // Predicated region
    $region30: #{tpu_custom_call.1} parent=1 // pred_check
      _
    $region31: #{tpu_custom_call.1} parent=1 // pred_check_branch
      %79 = sbr.rel (0) target = $region33
    $region32: #{tpu_custom_call.1} parent=1 // pred_region
      %80 = dma.done [#allocation3], 256
    $region33: #{tpu_custom_call.1} parent=1 // pred_fallthru
      _
    // Predicated region
    $region34: #{tpu_custom_call.1} parent=1 // pred_check
      _
    $region35: #{tpu_custom_call.1} parent=1 // pred_check_branch
      %82 = sbr.rel (0) target = $region37
    $region36: #{tpu_custom_call.1} parent=1 // pred_region
      %83 = dma.done [#allocation6], 512
    $region37: #{tpu_custom_call.1} parent=1 // pred_fallthru
      _
    // Predicated region
    $region38: #{tpu_custom_call.1} parent=1 // pred_check
      _
    $region39: #{tpu_custom_call.1} parent=1 // pred_check_branch
      %85 = sbr.rel (0) target = $region41
    $region40: #{tpu_custom_call.1} parent=1 // pred_region
      %86 = dma.done [#allocation6], 256
    $region41: #{tpu_custom_call.1} parent=1 // pred_fallthru
      _
    // Predicated region
    $region42: #{tpu_custom_call.1} parent=1 // pred_check
      _
    $region43: #{tpu_custom_call.1} parent=1 // pred_check_branch
      %88 = sbr.rel (0) target = $region45
    $region44: #{tpu_custom_call.1} parent=1 // pred_region
      %89 = dma.done [#allocation9], 12288
    $region45: #{tpu_custom_call.1} parent=1 // pred_fallthru
      _
    // Predicated region
    $region46: #{tpu_custom_call.1} parent=1 // pred_check
      _
    $region47: #{tpu_custom_call.1} parent=1 // pred_check_branch
      %91 = sbr.rel (0) target = $region49
    $region48: #{tpu_custom_call.1} parent=1 // pred_region
      %92 = dma.done [#allocation9], 3072
    $region49: #{tpu_custom_call.1} parent=1 // pred_fallthru
      _
    %v94 = vld [vmem:[#allocation2] sm:$0xff]
    %v95 = vld [vmem:[#allocation2 + $0x8] sm:$0xff]
    %v96 = vpack.c.bf16 %v95, %v94
    %v97 = vld [vmem:[#allocation5] sm:$0xff]
    %v98 = vld [vmem:[#allocation5 + $0x8] sm:$0xff]
    %v99 = vld [vmem:[#allocation5 + $0x10] sm:$0x11]
    %v100 = vld [vmem:[#allocation5 + $0x18] sm:$0x11]
    %v101 = vld [vmem:[#allocation7] ss:$4 sm:$0xf]
    %v103 = vlaneseq
    %v104 = vshrl.u32 %v103, 7
    %v105 = vsub.s32 0, %v104
    %v106 = vrot.slane %v101, %v105
    %v107 = vlaneseq
    %v108 = vshrl.u32 %v107, 7
    %v109 = vsub.s32 1, %v108
    %v110 = vrot.slane %v101, %v109
    %v111 = vlaneseq
    %v112 = vshrl.u32 %v111, 7
    %v113 = vsub.s32 2, %v112
    %v114 = vrot.slane %v101, %v113
    %v115 = vlaneseq
    %v116 = vshrl.u32 %v115, 7
    %v117 = vsub.s32 3, %v116
    %v118 = vrot.slane %v101, %v117
    %v127 = vunpack.c.l.b16 %v97
    %v128 = vunpack.c.h.b16 %v97
    %v129 = vunpack.c.l.b16 %v98
    %v130 = vunpack.c.h.b16 %v98
    %v131 = vunpack.c.l.b16 %v99
    %v132 = vunpack.c.h.b16 %v99
    %v133 = vunpack.c.l.b16 %v100
    %v134 = vunpack.c.h.b16 %v100
    %v135 = vpack.c.b16 %v131, %v127
    %v136 = vpack.c.b16 %v132, %v128
    %v137 = vpack.c.b16 %v133, %v129
    %v138 = vpack.c.b16 %v134, %v130
    %vm139 = vcmask 72704
    %v141 = vsel %vm139, %v96, 0
    %vm143 = vcmask 1043456
    %vm144 = vcmask 1044480
    %v145 = vsel %vm143, 4294967295, 65535
    %v146 = vsel %vm144, %v145, 0
    %v148 = vand.u32 %v135, %v146
    %v151 = vand.u32 %v136, %v146
    %v154 = vand.u32 %v137, %v146
    %v157 = vand.u32 %v138, %v146
    %159 = vmatprep.subr.bf16.mxu0 %v151
    %160 = vmatpush1.bf16.msra.mxu0 %v148
    %161 = vmatprep.subr.bf16.mxu0 0
    %162 = vmatpush1.bf16.msra.mxu0 0
    %163 = vmatprep.subr.bf16.mxu0 0
    %164 = vmatpush1.bf16.msra.mxu0 0
    %165 = vmatprep.subr.bf16.mxu0 0
    %166 = vmatpush1.bf16.msra.mxu0 0
    %167 = vmatprep.subr.bf16.mxu0 0
    %168 = vmatpush1.bf16.msra.mxu0 0
    %169 = vmatprep.subr.bf16.mxu0 0
    %170 = vmatpush1.bf16.msra.mxu0 0
    %171 = vmatprep.subr.bf16.mxu0 0
    %172 = vmatpush1.bf16.msra.mxu0 0
    %173 = vmatprep.subr.bf16.mxu0 0
    %174 = vmatpush1.bf16.msra.mxu0 0
    %175 = vmatprep.subr.bf16.mxu0 0
    %176 = vmatpush1.bf16.msra.mxu0 0
    %177 = vmatprep.subr.bf16.mxu0 0
    %178 = vmatpush1.bf16.msra.mxu0 0
    %179 = vmatprep.subr.bf16.mxu0 0
    %180 = vmatpush1.bf16.msra.mxu0 0
    %181 = vmatprep.subr.bf16.mxu0 0
    %182 = vmatpush1.bf16.msra.mxu0 0
    %183 = vmatprep.subr.bf16.mxu0 0
    %184 = vmatpush1.bf16.msra.mxu0 0
    %185 = vmatprep.subr.bf16.mxu0 0
    %186 = vmatpush1.bf16.msra.mxu0 0
    %187 = vmatprep.subr.bf16.mxu0 0
    %188 = vmatpush1.bf16.msra.mxu0 0
    %189 = vmatprep.subr.bf16.mxu0 0
    %190 = vmatpush1.bf16.msra.mxu0 0
    %191 = vmatprep.mubr.bf16.mxu0 0
    %192 = vmatmul.mubr.bf16.gmra.mrb[0].mxu0 %v141
    %v193 = vpop.f32.mrb[0].mxu0
    %v194 = vadd.f32 %v106, %v193
    %v195 = vpop.f32.mrb[0].mxu0
    %v196 = vadd.f32 %v110, %v195
    %v197 = vpop.f32.mrb[0].mxu0
    %v198 = vadd.f32 %v106, %v197
    %v199 = vpop.f32.mrb[0].mxu0
    %v200 = vadd.f32 %v110, %v199
    %201 = vdwg.mxu0
    %202 = vmatprep.subr.bf16.mxu0 %v157
    %203 = vmatpush1.bf16.msra.mxu0 %v154
    %204 = vmatprep.subr.bf16.mxu0 0
    %205 = vmatpush1.bf16.msra.mxu0 0
    %206 = vmatprep.subr.bf16.mxu0 0
    %207 = vmatpush1.bf16.msra.mxu0 0
    %208 = vmatprep.subr.bf16.mxu0 0
    %209 = vmatpush1.bf16.msra.mxu0 0
    %210 = vmatprep.subr.bf16.mxu0 0
    %211 = vmatpush1.bf16.msra.mxu0 0
    %212 = vmatprep.subr.bf16.mxu0 0
    %213 = vmatpush1.bf16.msra.mxu0 0
    %214 = vmatprep.subr.bf16.mxu0 0
    %215 = vmatpush1.bf16.msra.mxu0 0
    %216 = vmatprep.subr.bf16.mxu0 0
    %217 = vmatpush1.bf16.msra.mxu0 0
    %218 = vmatprep.subr.bf16.mxu0 0
    %219 = vmatpush1.bf16.msra.mxu0 0
    %220 = vmatprep.subr.bf16.mxu0 0
    %221 = vmatpush1.bf16.msra.mxu0 0
    %222 = vmatprep.subr.bf16.mxu0 0
    %223 = vmatpush1.bf16.msra.mxu0 0
    %224 = vmatprep.subr.bf16.mxu0 0
    %225 = vmatpush1.bf16.msra.mxu0 0
    %226 = vmatprep.subr.bf16.mxu0 0
    %227 = vmatpush1.bf16.msra.mxu0 0
    %228 = vmatprep.subr.bf16.mxu0 0
    %229 = vmatpush1.bf16.msra.mxu0 0
    %230 = vmatprep.subr.bf16.mxu0 0
    %231 = vmatpush1.bf16.msra.mxu0 0
    %232 = vmatprep.subr.bf16.mxu0 0
    %233 = vmatpush1.bf16.msra.mxu0 0
    %234 = vmatprep.mubr.bf16.mxu0 0
    %235 = vmatmul.mubr.bf16.gmra.mrb[0].mxu0 %v141
    %v236 = vpop.f32.mrb[0].mxu0
    %v237 = vadd.f32 %v114, %v236
    %v238 = vpop.f32.mrb[0].mxu0
    %v239 = vadd.f32 %v118, %v238
    %v240 = vpop.f32.mrb[0].mxu0
    %v241 = vadd.f32 %v114, %v240
    %v242 = vpop.f32.mrb[0].mxu0
    %v243 = vadd.f32 %v118, %v242
    %244 = vdwg.mxu0
    %s245 = scalar_lea.vmem [#allocation7], 1
    %v246 = vld [vmem:[%s245] ss:$4 sm:$0xf]
    %s247 = scalar_lea.vmem [#allocation7], 2
    %v248 = vld [vmem:[%s247] ss:$4 sm:$0xf]
    %v249 = vadd.f32 %v194, %v196
    %v250 = vadd.f32 %v249, %v237
    %v251 = vadd.f32 %v250, %v239
    %252 = vadd.xlane.f32.xlu0 %v251
    %v253 = vpop.xlane.xlu0 %252
    %v254 = vadd.f32 %v198, %v200
    %v255 = vadd.f32 %v254, %v241
    %v256 = vadd.f32 %v255, %v243
    %257 = vadd.xlane.f32.xlu0 %v256
    %v258 = vpop.xlane.xlu0 %257
    %v259 = vmul.f32 %v194, %v194
    %v260 = vmul.f32 %v196, %v196
    %v261 = vmul.f32 %v237, %v237
    %v262 = vmul.f32 %v239, %v239
    %v263 = vmul.f32 %v198, %v198
    %v264 = vmul.f32 %v200, %v200
    %v265 = vmul.f32 %v241, %v241
    %v266 = vmul.f32 %v243, %v243
    %v267 = vadd.f32 %v259, %v260
    %v268 = vadd.f32 %v267, %v261
    %v269 = vadd.f32 %v268, %v262
    %270 = vadd.xlane.f32.xlu0 %v269
    %v271 = vpop.xlane.xlu0 %270
    %v272 = vadd.f32 %v263, %v264
    %v273 = vadd.f32 %v272, %v265
    %v274 = vadd.f32 %v273, %v266
    %275 = vadd.xlane.f32.xlu0 %v274
    %v276 = vpop.xlane.xlu0 %275
    %v277 = vmul.f32 %v253, 0.0025
    %v278 = vmul.f32 %v258, 0.0025
    %v279 = vmul.f32 %v271, 0.0025
    %v280 = vmul.f32 %v276, 0.0025
    %v281 = vmul.f32 %v277, %v277
    %v282 = vmul.f32 %v278, %v278
    %v283 = vsub.f32 %v279, %v281
    %v284 = vsub.f32 %v280, %v282
    %v285 = vadd.f32 %v283, 1e-05
    %v286 = vadd.f32 %v284, 1e-05
    %v287 = vrsqrt.pop %v285
    %v288 = vrsqrt.pop %v286
    %v289 = vsub.f32 %v194, %v277
    %v290 = vsub.f32 %v196, %v277
    %v291 = vsub.f32 %v237, %v277
    %v292 = vsub.f32 %v239, %v277
    %v293 = vsub.f32 %v198, %v278
    %v294 = vsub.f32 %v200, %v278
    %v295 = vsub.f32 %v241, %v278
    %v296 = vsub.f32 %v243, %v278
    %v297 = vmul.f32 %v289, %v287
    %v298 = vmul.f32 %v290, %v287
    %v299 = vmul.f32 %v291, %v287
    %v300 = vmul.f32 %v292, %v287
    %v301 = vmul.f32 %v293, %v288
    %v302 = vmul.f32 %v294, %v288
    %v303 = vmul.f32 %v295, %v288
    %v304 = vmul.f32 %v296, %v288
    %v306 = vlaneseq
    %v307 = vshrl.u32 %v306, 7
    %v308 = vsub.s32 0, %v307
    %v309 = vrot.slane %v246, %v308
    %v310 = vlaneseq
    %v311 = vshrl.u32 %v310, 7
    %v312 = vsub.s32 1, %v311
    %v313 = vrot.slane %v246, %v312
    %v314 = vlaneseq
    %v315 = vshrl.u32 %v314, 7
    %v316 = vsub.s32 2, %v315
    %v317 = vrot.slane %v246, %v316
    %v318 = vlaneseq
    %v319 = vshrl.u32 %v318, 7
    %v320 = vsub.s32 3, %v319
    %v321 = vrot.slane %v246, %v320
    %v326 = vmul.f32 %v297, %v309
    %v327 = vmul.f32 %v298, %v313
    %v328 = vmul.f32 %v299, %v317
    %v329 = vmul.f32 %v300, %v321
    %v330 = vmul.f32 %v301, %v309
    %v331 = vmul.f32 %v302, %v313
    %v332 = vmul.f32 %v303, %v317
    %v333 = vmul.f32 %v304, %v321
    %v335 = vlaneseq
    %v336 = vshrl.u32 %v335, 7
    %v337 = vsub.s32 0, %v336
    %v338 = vrot.slane %v248, %v337
    %v339 = vlaneseq
    %v340 = vshrl.u32 %v339, 7
    %v341 = vsub.s32 1, %v340
    %v342 = vrot.slane %v248, %v341
    %v343 = vlaneseq
    %v344 = vshrl.u32 %v343, 7
    %v345 = vsub.s32 2, %v344
    %v346 = vrot.slane %v248, %v345
    %v347 = vlaneseq
    %v348 = vshrl.u32 %v347, 7
    %v349 = vsub.s32 3, %v348
    %v350 = vrot.slane %v248, %v349
    %v355 = vadd.f32 %v326, %v338
    %v356 = vadd.f32 %v327, %v342
    %v357 = vadd.f32 %v328, %v346
    %v358 = vadd.f32 %v329, %v350
    %v359 = vadd.f32 %v330, %v338
    %v360 = vadd.f32 %v331, %v342
    %v361 = vadd.f32 %v332, %v346
    %v362 = vadd.f32 %v333, %v350
    %v363 = vmax.f32 %v355, 0.0
    %v364 = vmax.f32 %v356, 0.0
    %v365 = vmax.f32 %v357, 0.0
    %v366 = vmax.f32 %v358, 0.0
    %v367 = vmax.f32 %v359, 0.0
    %v368 = vmax.f32 %v360, 0.0
    %v369 = vmax.f32 %v361, 0.0
    %v370 = vmax.f32 %v362, 0.0
    %v371 = vpack.c.bf16 %v367, %v363
    %v372 = vpack.c.bf16 %v368, %v364
    %v373 = vpack.c.bf16 %v369, %v365
    %v374 = vpack.c.bf16 %v370, %v366
    %v375 = vld [vmem:[#allocation8] sm:$0xff]
    %v376 = vld [vmem:[#allocation8 + $0x8] sm:$0xf]
    %v377 = vld [vmem:[#allocation8 + $0xc] sm:$0xff]
    %v378 = vld [vmem:[#allocation8 + $0x14] sm:$0xf]
    %v379 = vld [vmem:[#allocation8 + $0x18] sm:$0xff]
    %v380 = vld [vmem:[#allocation8 + $0x20] sm:$0xf]
    %v381 = vld [vmem:[#allocation8 + $0x24] sm:$0xff]
    %v382 = vld [vmem:[#allocation8 + $0x2c] sm:$0xf]
    %v383 = vld [vmem:[#allocation8 + $0x30] sm:$0xff]
    %v384 = vld [vmem:[#allocation8 + $0x38] sm:$0xf]
    %v385 = vld [vmem:[#allocation8 + $0x3c] sm:$0xff]
    %v386 = vld [vmem:[#allocation8 + $0x44] sm:$0xf]
    %v387 = vld [vmem:[#allocation8 + $0x48] sm:$0xff]
    %v388 = vld [vmem:[#allocation8 + $0x50] sm:$0xf]
    %v389 = vld [vmem:[#allocation8 + $0x54] sm:$0xff]
    %v390 = vld [vmem:[#allocation8 + $0x5c] sm:$0xf]
    %v391 = vld [vmem:[#allocation8 + $0x60] sm:$0xff]
    %v392 = vld [vmem:[#allocation8 + $0x68] sm:$0xf]
    %v393 = vld [vmem:[#allocation8 + $0x6c] sm:$0xff]
    %v394 = vld [vmem:[#allocation8 + $0x74] sm:$0xf]
    %v395 = vld [vmem:[#allocation8 + $0x78] sm:$0xff]
    %v396 = vld [vmem:[#allocation8 + $0x80] sm:$0xf]
    %v397 = vld [vmem:[#allocation8 + $0x84] sm:$0xff]
    %v398 = vld [vmem:[#allocation8 + $0x8c] sm:$0xf]
    %v399 = vld [vmem:[#allocation8 + $0x90] sm:$0xff]
    %v400 = vld [vmem:[#allocation8 + $0x98] sm:$0xf]
    %v401 = vld [vmem:[#allocation8 + $0x9c] sm:$0xff]
    %v402 = vld [vmem:[#allocation8 + $0xa4] sm:$0xf]
    %v403 = vld [vmem:[#allocation8 + $0xa8] sm:$0xff]
    %v404 = vld [vmem:[#allocation8 + $0xb0] sm:$0xf]
    %v405 = vld [vmem:[#allocation8 + $0xb4] sm:$0xff]
    %v406 = vld [vmem:[#allocation8 + $0xbc] sm:$0xf]
    %v407 = vld [vmem:[#allocation8 + $0xc0] sm:$0xff]
    %v408 = vld [vmem:[#allocation8 + $0xc8] sm:$0xf]
    %v409 = vld [vmem:[#allocation8 + $0xcc] sm:$0xff]
    %v410 = vld [vmem:[#allocation8 + $0xd4] sm:$0xf]
    %v411 = vld [vmem:[#allocation8 + $0xd8] sm:$0xff]
    %v412 = vld [vmem:[#allocation8 + $0xe0] sm:$0xf]
    %v413 = vld [vmem:[#allocation8 + $0xe4] sm:$0xff]
    %v414 = vld [vmem:[#allocation8 + $0xec] sm:$0xf]
    %v415 = vld [vmem:[#allocation8 + $0xf0] sm:$0xff]
    %v416 = vld [vmem:[#allocation8 + $0xf8] sm:$0xf]
    %v417 = vld [vmem:[#allocation8 + $0xfc] sm:$0xff]
    %v418 = vld [vmem:[#allocation8 + $0x104] sm:$0xf]
    %v419 = vld [vmem:[#allocation8 + $0x108] sm:$0xff]
    %v420 = vld [vmem:[#allocation8 + $0x110] sm:$0xf]
    %v421 = vld [vmem:[#allocation8 + $0x114] sm:$0xff]
    %v422 = vld [vmem:[#allocation8 + $0x11c] sm:$0xf]
    %v423 = vld [vmem:[#allocation8 + $0x120] sm:$0xff]
    %v424 = vld [vmem:[#allocation8 + $0x128] sm:$0xf]
    %v425 = vld [vmem:[#allocation8 + $0x12c] sm:$0xff]
    %v426 = vld [vmem:[#allocation8 + $0x134] sm:$0xf]
    %v427 = vld [vmem:[#allocation8 + $0x138] sm:$0xff]
    %v428 = vld [vmem:[#allocation8 + $0x140] sm:$0xf]
    %v429 = vld [vmem:[#allocation8 + $0x144] sm:$0xff]
    %v430 = vld [vmem:[#allocation8 + $0x14c] sm:$0xf]
    %v431 = vld [vmem:[#allocation8 + $0x150] sm:$0xff]
    %v432 = vld [vmem:[#allocation8 + $0x158] sm:$0xf]
    %v433 = vld [vmem:[#allocation8 + $0x15c] sm:$0xff]
    %v434 = vld [vmem:[#allocation8 + $0x164] sm:$0xf]
    %v435 = vld [vmem:[#allocation8 + $0x168] sm:$0xff]
    %v436 = vld [vmem:[#allocation8 + $0x170] sm:$0xf]
    %v437 = vld [vmem:[#allocation8 + $0x174] sm:$0xff]
    %v438 = vld [vmem:[#allocation8 + $0x17c] sm:$0xf]
    %v439 = vld [vmem:[#allocation8 + $0x180] sm:$0xff]
    %v440 = vld [vmem:[#allocation8 + $0x188] sm:$0xf]
    %v441 = vld [vmem:[#allocation8 + $0x18c] sm:$0xff]
    %v442 = vld [vmem:[#allocation8 + $0x194] sm:$0xf]
    %v443 = vld [vmem:[#allocation8 + $0x198] sm:$0xff]
    %v444 = vld [vmem:[#allocation8 + $0x1a0] sm:$0xf]
    %v445 = vld [vmem:[#allocation8 + $0x1a4] sm:$0xff]
    %v446 = vld [vmem:[#allocation8 + $0x1ac] sm:$0xf]
    %v447 = vld [vmem:[#allocation8 + $0x1b0] sm:$0xff]
    %v448 = vld [vmem:[#allocation8 + $0x1b8] sm:$0xf]
    %v449 = vld [vmem:[#allocation8 + $0x1bc] sm:$0xff]
    %v450 = vld [vmem:[#allocation8 + $0x1c4] sm:$0xf]
    %v451 = vld [vmem:[#allocation8 + $0x1c8] sm:$0xff]
    %v452 = vld [vmem:[#allocation8 + $0x1d0] sm:$0xf]
    %v453 = vld [vmem:[#allocation8 + $0x1d4] sm:$0xff]
    %v454 = vld [vmem:[#allocation8 + $0x1dc] sm:$0xf]
    %v455 = vld [vmem:[#allocation8 + $0x1e0] sm:$0xff]
    %v456 = vld [vmem:[#allocation8 + $0x1e8] sm:$0xf]
    %v457 = vld [vmem:[#allocation8 + $0x1ec] sm:$0xff]
    %v458 = vld [vmem:[#allocation8 + $0x1f4] sm:$0xf]
    %v459 = vld [vmem:[#allocation8 + $0x1f8] sm:$0xff]
    %v460 = vld [vmem:[#allocation8 + $0x200] sm:$0xf]
    %v461 = vld [vmem:[#allocation8 + $0x204] sm:$0xff]
    %v462 = vld [vmem:[#allocation8 + $0x20c] sm:$0xf]
    %v463 = vld [vmem:[#allocation8 + $0x210] sm:$0xff]
    %v464 = vld [vmem:[#allocation8 + $0x218] sm:$0xf]
    %v465 = vld [vmem:[#allocation8 + $0x21c] sm:$0xff]
    %v466 = vld [vmem:[#allocation8 + $0x224] sm:$0xf]
    %v467 = vld [vmem:[#allocation8 + $0x228] sm:$0xff]
    %v468 = vld [vmem:[#allocation8 + $0x230] sm:$0xf]
    %v469 = vld [vmem:[#allocation8 + $0x234] sm:$0xff]
    %v470 = vld [vmem:[#allocation8 + $0x23c] sm:$0xf]
    %v471 = vld [vmem:[#allocation8 + $0x240] sm:$0xff]
    %v472 = vld [vmem:[#allocation8 + $0x248] sm:$0xf]
    %v473 = vld [vmem:[#allocation8 + $0x24c] sm:$0xff]
    %v474 = vld [vmem:[#allocation8 + $0x254] sm:$0xf]
    %v475 = vld [vmem:[#allocation8 + $0x258] sm:$0xff]
    %v476 = vld [vmem:[#allocation8 + $0x260] sm:$0xf]
    %v477 = vld [vmem:[#allocation8 + $0x264] sm:$0xff]
    %v478 = vld [vmem:[#allocation8 + $0x26c] sm:$0xf]
    %v479 = vld [vmem:[#allocation8 + $0x270] sm:$0xff]
    %v480 = vld [vmem:[#allocation8 + $0x278] sm:$0xf]
    %v481 = vld [vmem:[#allocation8 + $0x27c] sm:$0xff]
    %v482 = vld [vmem:[#allocation8 + $0x284] sm:$0xf]
    %v483 = vld [vmem:[#allocation8 + $0x288] sm:$0xff]
    %v484 = vld [vmem:[#allocation8 + $0x290] sm:$0xf]
    %v485 = vld [vmem:[#allocation8 + $0x294] sm:$0xff]
    %v486 = vld [vmem:[#allocation8 + $0x29c] sm:$0xf]
    %v487 = vld [vmem:[#allocation8 + $0x2a0] sm:$0xff]
    %v488 = vld [vmem:[#allocation8 + $0x2a8] sm:$0xf]
    %v489 = vld [vmem:[#allocation8 + $0x2ac] sm:$0xff]
    %v490 = vld [vmem:[#allocation8 + $0x2b4] sm:$0xf]
    %v491 = vld [vmem:[#allocation8 + $0x2b8] sm:$0xff]
    %v492 = vld [vmem:[#allocation8 + $0x2c0] sm:$0xf]
    %v493 = vld [vmem:[#allocation8 + $0x2c4] sm:$0xff]
    %v494 = vld [vmem:[#allocation8 + $0x2cc] sm:$0xf]
    %v495 = vld [vmem:[#allocation8 + $0x2d0] sm:$0xff]
    %v496 = vld [vmem:[#allocation8 + $0x2d8] sm:$0xf]
    %v497 = vld [vmem:[#allocation8 + $0x2dc] sm:$0xff]
    %v498 = vld [vmem:[#allocation8 + $0x2e4] sm:$0xf]
    %v499 = vld [vmem:[#allocation8 + $0x2e8] sm:$0xff]
    %v500 = vld [vmem:[#allocation8 + $0x2f0] sm:$0xf]
    %v501 = vld [vmem:[#allocation8 + $0x2f4] sm:$0xff]
    %v502 = vld [vmem:[#allocation8 + $0x2fc] sm:$0xf]
    %v503 = vld [vmem:[%s4] ss:$4 sm:$0x7]
    %v505 = vlaneseq
    %v506 = vshrl.u32 %v505, 7
    %v507 = vsub.s32 0, %v506
    %v508 = vrot.slane %v503, %v507
    %v509 = vlaneseq
    %v510 = vshrl.u32 %v509, 7
    %v511 = vsub.s32 1, %v510
    %v512 = vrot.slane %v503, %v511
    %v513 = vlaneseq
    %v514 = vshrl.u32 %v513, 7
    %v515 = vsub.s32 2, %v514
    %v516 = vrot.slane %v503, %v515
    %v648 = vunpack.c.l.b16 %v375
    %v649 = vunpack.c.h.b16 %v375
    %v650 = vunpack.c.l.b16 %v376
    %v651 = vunpack.c.l.b16 %v377
    %v652 = vunpack.c.h.b16 %v377
    %v653 = vunpack.c.l.b16 %v378
    %v654 = vunpack.c.l.b16 %v379
    %v655 = vunpack.c.h.b16 %v379
    %v656 = vunpack.c.l.b16 %v380
    %v657 = vunpack.c.l.b16 %v381
    %v658 = vunpack.c.h.b16 %v381
    %v659 = vunpack.c.l.b16 %v382
    %v660 = vunpack.c.l.b16 %v383
    %v661 = vunpack.c.h.b16 %v383
    %v662 = vunpack.c.l.b16 %v384
    %v663 = vunpack.c.l.b16 %v385
    %v664 = vunpack.c.h.b16 %v385
    %v665 = vunpack.c.l.b16 %v386
    %v666 = vunpack.c.l.b16 %v387
    %v667 = vunpack.c.h.b16 %v387
    %v668 = vunpack.c.l.b16 %v388
    %v669 = vunpack.c.l.b16 %v389
    %v670 = vunpack.c.h.b16 %v389
    %v671 = vunpack.c.l.b16 %v390
    %v672 = vunpack.c.l.b16 %v391
    %v673 = vunpack.c.h.b16 %v391
    %v674 = vunpack.c.l.b16 %v392
    %v675 = vunpack.c.l.b16 %v393
    %v676 = vunpack.c.h.b16 %v393
    %v677 = vunpack.c.l.b16 %v394
    %v678 = vunpack.c.l.b16 %v395
    %v679 = vunpack.c.h.b16 %v395
    %v680 = vunpack.c.l.b16 %v396
    %v681 = vunpack.c.l.b16 %v397
    %v682 = vunpack.c.h.b16 %v397
    %v683 = vunpack.c.l.b16 %v398
    %v684 = vunpack.c.l.b16 %v399
    %v685 = vunpack.c.h.b16 %v399
    %v686 = vunpack.c.l.b16 %v400
    %v687 = vunpack.c.l.b16 %v401
    %v688 = vunpack.c.h.b16 %v401
    %v689 = vunpack.c.l.b16 %v402
    %v690 = vunpack.c.l.b16 %v403
    %v691 = vunpack.c.h.b16 %v403
    %v692 = vunpack.c.l.b16 %v404
    %v693 = vunpack.c.l.b16 %v405
    %v694 = vunpack.c.h.b16 %v405
    %v695 = vunpack.c.l.b16 %v406
    %v696 = vunpack.c.l.b16 %v407
    %v697 = vunpack.c.h.b16 %v407
    %v698 = vunpack.c.l.b16 %v408
    %v699 = vunpack.c.l.b16 %v409
    %v700 = vunpack.c.h.b16 %v409
    %v701 = vunpack.c.l.b16 %v410
    %v702 = vunpack.c.l.b16 %v411
    %v703 = vunpack.c.h.b16 %v411
    %v704 = vunpack.c.l.b16 %v412
    %v705 = vunpack.c.l.b16 %v413
    %v706 = vunpack.c.h.b16 %v413
    %v707 = vunpack.c.l.b16 %v414
    %v708 = vunpack.c.l.b16 %v415
    %v709 = vunpack.c.h.b16 %v415
    %v710 = vunpack.c.l.b16 %v416
    %v711 = vunpack.c.l.b16 %v417
    %v712 = vunpack.c.h.b16 %v417
    %v713 = vunpack.c.l.b16 %v418
    %v714 = vunpack.c.l.b16 %v419
    %v715 = vunpack.c.h.b16 %v419
    %v716 = vunpack.c.l.b16 %v420
    %v717 = vunpack.c.l.b16 %v421
    %v718 = vunpack.c.h.b16 %v421
    %v719 = vunpack.c.l.b16 %v422
    %v720 = vunpack.c.l.b16 %v423
    %v721 = vunpack.c.h.b16 %v423
    %v722 = vunpack.c.l.b16 %v424
    %v723 = vunpack.c.l.b16 %v425
    %v724 = vunpack.c.h.b16 %v425
    %v725 = vunpack.c.l.b16 %v426
    %v726 = vunpack.c.l.b16 %v427
    %v727 = vunpack.c.h.b16 %v427
    %v728 = vunpack.c.l.b16 %v428
    %v729 = vunpack.c.l.b16 %v429
    %v730 = vunpack.c.h.b16 %v429
    %v731 = vunpack.c.l.b16 %v430
    %v732 = vunpack.c.l.b16 %v431
    %v733 = vunpack.c.h.b16 %v431
    %v734 = vunpack.c.l.b16 %v432
    %v735 = vunpack.c.l.b16 %v433
    %v736 = vunpack.c.h.b16 %v433
    %v737 = vunpack.c.l.b16 %v434
    %v738 = vunpack.c.l.b16 %v435
    %v739 = vunpack.c.h.b16 %v435
    %v740 = vunpack.c.l.b16 %v436
    %v741 = vunpack.c.l.b16 %v437
    %v742 = vunpack.c.h.b16 %v437
    %v743 = vunpack.c.l.b16 %v438
    %v744 = vunpack.c.l.b16 %v439
    %v745 = vunpack.c.h.b16 %v439
    %v746 = vunpack.c.l.b16 %v440
    %v747 = vunpack.c.l.b16 %v441
    %v748 = vunpack.c.h.b16 %v441
    %v749 = vunpack.c.l.b16 %v442
    %v750 = vunpack.c.l.b16 %v443
    %v751 = vunpack.c.h.b16 %v443
    %v752 = vunpack.c.l.b16 %v444
    %v753 = vunpack.c.l.b16 %v445
    %v754 = vunpack.c.h.b16 %v445
    %v755 = vunpack.c.l.b16 %v446
    %v756 = vunpack.c.l.b16 %v447
    %v757 = vunpack.c.h.b16 %v447
    %v758 = vunpack.c.l.b16 %v448
    %v759 = vunpack.c.l.b16 %v449
    %v760 = vunpack.c.h.b16 %v449
    %v761 = vunpack.c.l.b16 %v450
    %v762 = vunpack.c.l.b16 %v451
    %v763 = vunpack.c.h.b16 %v451
    %v764 = vunpack.c.l.b16 %v452
    %v765 = vunpack.c.l.b16 %v453
    %v766 = vunpack.c.h.b16 %v453
    %v767 = vunpack.c.l.b16 %v454
    %v768 = vunpack.c.l.b16 %v455
    %v769 = vunpack.c.h.b16 %v455
    %v770 = vunpack.c.l.b16 %v456
    %v771 = vunpack.c.l.b16 %v457
    %v772 = vunpack.c.h.b16 %v457
    %v773 = vunpack.c.l.b16 %v458
    %v774 = vunpack.c.l.b16 %v459
    %v775 = vunpack.c.h.b16 %v459
    %v776 = vunpack.c.l.b16 %v460
    %v777 = vunpack.c.l.b16 %v461
    %v778 = vunpack.c.h.b16 %v461
    %v779 = vunpack.c.l.b16 %v462
    %v780 = vunpack.c.l.b16 %v463
    %v781 = vunpack.c.h.b16 %v463
    %v782 = vunpack.c.l.b16 %v464
    %v783 = vunpack.c.l.b16 %v465
    %v784 = vunpack.c.h.b16 %v465
    %v785 = vunpack.c.l.b16 %v466
    %v786 = vunpack.c.l.b16 %v467
    %v787 = vunpack.c.h.b16 %v467
    %v788 = vunpack.c.l.b16 %v468
    %v789 = vunpack.c.l.b16 %v469
    %v790 = vunpack.c.h.b16 %v469
    %v791 = vunpack.c.l.b16 %v470
    %v792 = vunpack.c.l.b16 %v471
    %v793 = vunpack.c.h.b16 %v471
    %v794 = vunpack.c.l.b16 %v472
    %v795 = vunpack.c.l.b16 %v473
    %v796 = vunpack.c.h.b16 %v473
    %v797 = vunpack.c.l.b16 %v474
    %v798 = vunpack.c.l.b16 %v475
    %v799 = vunpack.c.h.b16 %v475
    %v800 = vunpack.c.l.b16 %v476
    %v801 = vunpack.c.l.b16 %v477
    %v802 = vunpack.c.h.b16 %v477
    %v803 = vunpack.c.l.b16 %v478
    %v804 = vunpack.c.l.b16 %v479
    %v805 = vunpack.c.h.b16 %v479
    %v806 = vunpack.c.l.b16 %v480
    %v807 = vunpack.c.l.b16 %v481
    %v808 = vunpack.c.h.b16 %v481
    %v809 = vunpack.c.l.b16 %v482
    %v810 = vunpack.c.l.b16 %v483
    %v811 = vunpack.c.h.b16 %v483
    %v812 = vunpack.c.l.b16 %v484
    %v813 = vunpack.c.l.b16 %v485
    %v814 = vunpack.c.h.b16 %v485
    %v815 = vunpack.c.l.b16 %v486
    %v816 = vunpack.c.l.b16 %v487
    %v817 = vunpack.c.h.b16 %v487
    %v818 = vunpack.c.l.b16 %v488
    %v819 = vunpack.c.l.b16 %v489
    %v820 = vunpack.c.h.b16 %v489
    %v821 = vunpack.c.l.b16 %v490
    %v822 = vunpack.c.l.b16 %v491
    %v823 = vunpack.c.h.b16 %v491
    %v824 = vunpack.c.l.b16 %v492
    %v825 = vunpack.c.l.b16 %v493
    %v826 = vunpack.c.h.b16 %v493
    %v827 = vunpack.c.l.b16 %v494
    %v828 = vunpack.c.l.b16 %v495
    %v829 = vunpack.c.h.b16 %v495
    %v830 = vunpack.c.l.b16 %v496
    %v831 = vunpack.c.l.b16 %v497
    %v832 = vunpack.c.h.b16 %v497
    %v833 = vunpack.c.l.b16 %v498
    %v834 = vunpack.c.l.b16 %v499
    %v835 = vunpack.c.h.b16 %v499
    %v836 = vunpack.c.l.b16 %v500
    %v837 = vunpack.c.l.b16 %v501
    %v838 = vunpack.c.h.b16 %v501
    %v839 = vunpack.c.l.b16 %v502
    %v840 = vpack.c.b16 %v651, %v648
    %v841 = vpack.c.b16 %v652, %v649
    %v842 = vpack.c.b16 %v653, %v650
    %v843 = vpack.c.b16 %v657, %v654
    %v844 = vpack.c.b16 %v658, %v655
    %v845 = vpack.c.b16 %v659, %v656
    %v846 = vpack.c.b16 %v663, %v660
    %v847 = vpack.c.b16 %v664, %v661
    %v848 = vpack.c.b16 %v665, %v662
    %v849 = vpack.c.b16 %v669, %v666
    %v850 = vpack.c.b16 %v670, %v667
    %v851 = vpack.c.b16 %v671, %v668
    %v852 = vpack.c.b16 %v675, %v672
    %v853 = vpack.c.b16 %v676, %v673
    %v854 = vpack.c.b16 %v677, %v674
    %v855 = vpack.c.b16 %v681, %v678
    %v856 = vpack.c.b16 %v682, %v679
    %v857 = vpack.c.b16 %v683, %v680
    %v858 = vpack.c.b16 %v687, %v684
    %v859 = vpack.c.b16 %v688, %v685
    %v860 = vpack.c.b16 %v689, %v686
    %v861 = vpack.c.b16 %v693, %v690
    %v862 = vpack.c.b16 %v694, %v691
    %v863 = vpack.c.b16 %v695, %v692
    %v864 = vpack.c.b16 %v699, %v696
    %v865 = vpack.c.b16 %v700, %v697
    %v866 = vpack.c.b16 %v701, %v698
    %v867 = vpack.c.b16 %v705, %v702
    %v868 = vpack.c.b16 %v706, %v703
    %v869 = vpack.c.b16 %v707, %v704
    %v870 = vpack.c.b16 %v711, %v708
    %v871 = vpack.c.b16 %v712, %v709
    %v872 = vpack.c.b16 %v713, %v710
    %v873 = vpack.c.b16 %v717, %v714
    %v874 = vpack.c.b16 %v718, %v715
    %v875 = vpack.c.b16 %v719, %v716
    %v876 = vpack.c.b16 %v723, %v720
    %v877 = vpack.c.b16 %v724, %v721
    %v878 = vpack.c.b16 %v725, %v722
    %v879 = vpack.c.b16 %v729, %v726
    %v880 = vpack.c.b16 %v730, %v727
    %v881 = vpack.c.b16 %v731, %v728
    %v882 = vpack.c.b16 %v735, %v732
    %v883 = vpack.c.b16 %v736, %v733
    %v884 = vpack.c.b16 %v737, %v734
    %v885 = vpack.c.b16 %v741, %v738
    %v886 = vpack.c.b16 %v742, %v739
    %v887 = vpack.c.b16 %v743, %v740
    %v888 = vpack.c.b16 %v747, %v744
    %v889 = vpack.c.b16 %v748, %v745
    %v890 = vpack.c.b16 %v749, %v746
    %v891 = vpack.c.b16 %v753, %v750
    %v892 = vpack.c.b16 %v754, %v751
    %v893 = vpack.c.b16 %v755, %v752
    %v894 = vpack.c.b16 %v759, %v756
    %v895 = vpack.c.b16 %v760, %v757
    %v896 = vpack.c.b16 %v761, %v758
    %v897 = vpack.c.b16 %v765, %v762
    %v898 = vpack.c.b16 %v766, %v763
    %v899 = vpack.c.b16 %v767, %v764
    %v900 = vpack.c.b16 %v771, %v768
    %v901 = vpack.c.b16 %v772, %v769
    %v902 = vpack.c.b16 %v773, %v770
    %v903 = vpack.c.b16 %v777, %v774
    %v904 = vpack.c.b16 %v778, %v775
    %v905 = vpack.c.b16 %v779, %v776
    %v906 = vpack.c.b16 %v783, %v780
    %v907 = vpack.c.b16 %v784, %v781
    %v908 = vpack.c.b16 %v785, %v782
    %v909 = vpack.c.b16 %v789, %v786
    %v910 = vpack.c.b16 %v790, %v787
    %v911 = vpack.c.b16 %v791, %v788
    %v912 = vpack.c.b16 %v795, %v792
    %v913 = vpack.c.b16 %v796, %v793
    %v914 = vpack.c.b16 %v797, %v794
    %v915 = vpack.c.b16 %v801, %v798
    %v916 = vpack.c.b16 %v802, %v799
    %v917 = vpack.c.b16 %v803, %v800
    %v918 = vpack.c.b16 %v807, %v804
    %v919 = vpack.c.b16 %v808, %v805
    %v920 = vpack.c.b16 %v809, %v806
    %v921 = vpack.c.b16 %v813, %v810
    %v922 = vpack.c.b16 %v814, %v811
    %v923 = vpack.c.b16 %v815, %v812
    %v924 = vpack.c.b16 %v819, %v816
    %v925 = vpack.c.b16 %v820, %v817
    %v926 = vpack.c.b16 %v821, %v818
    %v927 = vpack.c.b16 %v825, %v822
    %v928 = vpack.c.b16 %v826, %v823
    %v929 = vpack.c.b16 %v827, %v824
    %v930 = vpack.c.b16 %v831, %v828
    %v931 = vpack.c.b16 %v832, %v829
    %v932 = vpack.c.b16 %v833, %v830
    %v933 = vpack.c.b16 %v837, %v834
    %v934 = vpack.c.b16 %v838, %v835
    %v935 = vpack.c.b16 %v839, %v836
    %1032 = vmatprep.subr.bf16.mxu0 %v841
    %1033 = vmatpush1.bf16.msra.mxu0 %v840
    %1034 = vmatprep.subr.bf16.mxu0 %v844
    %1035 = vmatpush1.bf16.msra.mxu0 %v843
    %1036 = vmatprep.subr.bf16.mxu0 %v847
    %1037 = vmatpush1.bf16.msra.mxu0 %v846
    %1038 = vmatprep.subr.bf16.mxu0 %v850
    %1039 = vmatpush1.bf16.msra.mxu0 %v849
    %1040 = vmatprep.subr.bf16.mxu0 %v853
    %1041 = vmatpush1.bf16.msra.mxu0 %v852
    %1042 = vmatprep.subr.bf16.mxu0 %v856
    %1043 = vmatpush1.bf16.msra.mxu0 %v855
    %1044 = vmatprep.subr.bf16.mxu0 %v859
    %1045 = vmatpush1.bf16.msra.mxu0 %v858
    %1046 = vmatprep.subr.bf16.mxu0 %v862
    %1047 = vmatpush1.bf16.msra.mxu0 %v861
    %1048 = vmatprep.subr.bf16.mxu0 %v865
    %1049 = vmatpush1.bf16.msra.mxu0 %v864
    %1050 = vmatprep.subr.bf16.mxu0 %v868
    %1051 = vmatpush1.bf16.msra.mxu0 %v867
    %1052 = vmatprep.subr.bf16.mxu0 %v871
    %1053 = vmatpush1.bf16.msra.mxu0 %v870
    %1054 = vmatprep.subr.bf16.mxu0 %v874
    %1055 = vmatpush1.bf16.msra.mxu0 %v873
    %1056 = vmatprep.subr.bf16.mxu0 %v877
    %1057 = vmatpush1.bf16.msra.mxu0 %v876
    %1058 = vmatprep.subr.bf16.mxu0 %v880
    %1059 = vmatpush1.bf16.msra.mxu0 %v879
    %1060 = vmatprep.subr.bf16.mxu0 %v883
    %1061 = vmatpush1.bf16.msra.mxu0 %v882
    %1062 = vmatprep.subr.bf16.mxu0 %v886
    %1063 = vmatpush1.bf16.msra.mxu0 %v885
    %1064 = vmatprep.mubr.bf16.mxu0 %v372
    %1065 = vmatmul.mubr.bf16.gmra.mrb[0].mxu0 %v371
    %v1066 = vpop.f32.mrb[0].mxu0
    %v1067 = vadd.f32 %v508, %v1066
    %v1068 = vpop.f32.mrb[0].mxu0
    %v1069 = vadd.f32 %v512, %v1068
    %v1070 = vpop.f32.mrb[0].mxu0
    %v1071 = vadd.f32 %v508, %v1070
    %v1072 = vpop.f32.mrb[0].mxu0
    %v1073 = vadd.f32 %v512, %v1072
    %1074 = vdwg.mxu0
    %1075 = vmatprep.subr.bf16.mxu0 %v889
    %1076 = vmatpush1.bf16.msra.mxu0 %v888
    %1077 = vmatprep.subr.bf16.mxu0 %v892
    %1078 = vmatpush1.bf16.msra.mxu0 %v891
    %1079 = vmatprep.subr.bf16.mxu0 %v895
    %1080 = vmatpush1.bf16.msra.mxu0 %v894
    %1081 = vmatprep.subr.bf16.mxu0 %v898
    %1082 = vmatpush1.bf16.msra.mxu0 %v897
    %1083 = vmatprep.subr.bf16.mxu0 %v901
    %1084 = vmatpush1.bf16.msra.mxu0 %v900
    %1085 = vmatprep.subr.bf16.mxu0 %v904
    %1086 = vmatpush1.bf16.msra.mxu0 %v903
    %1087 = vmatprep.subr.bf16.mxu0 %v907
    %1088 = vmatpush1.bf16.msra.mxu0 %v906
    %1089 = vmatprep.subr.bf16.mxu0 %v910
    %1090 = vmatpush1.bf16.msra.mxu0 %v909
    %1091 = vmatprep.subr.bf16.mxu0 %v913
    %1092 = vmatpush1.bf16.msra.mxu0 %v912
    %1093 = vmatprep.subr.bf16.mxu0 %v916
    %1094 = vmatpush1.bf16.msra.mxu0 %v915
    %1095 = vmatprep.subr.bf16.mxu0 %v919
    %1096 = vmatpush1.bf16.msra.mxu0 %v918
    %1097 = vmatprep.subr.bf16.mxu0 %v922
    %1098 = vmatpush1.bf16.msra.mxu0 %v921
    %1099 = vmatprep.subr.bf16.mxu0 %v925
    %1100 = vmatpush1.bf16.msra.mxu0 %v924
    %1101 = vmatprep.subr.bf16.mxu0 %v928
    %1102 = vmatpush1.bf16.msra.mxu0 %v927
    %1103 = vmatprep.subr.bf16.mxu0 %v931
    %1104 = vmatpush1.bf16.msra.mxu0 %v930
    %1105 = vmatprep.subr.bf16.mxu0 %v934
    %1106 = vmatpush1.bf16.msra.mxu0 %v933
    %1107 = vmatprep.mubr.bf16.mxu0 %v374
    %1108 = vmatmul.mubr.bf16.gmra.mrb[0].mxu0 %v373
    %v1109 = vpop.f32.mrb[0].mxu0
    %v1110 = vadd.f32 %v1067, %v1109
    %v1111 = vpop.f32.mrb[0].mxu0
    %v1112 = vadd.f32 %v1069, %v1111
    %v1113 = vpop.f32.mrb[0].mxu0
    %v1114 = vadd.f32 %v1071, %v1113
    %v1115 = vpop.f32.mrb[0].mxu0
    %v1116 = vadd.f32 %v1073, %v1115
    %1117 = vdwg.mxu0
    %1118 = vmatprep.subr.bf16.mxu0 0
    %1119 = vmatpush1.bf16.msra.mxu0 %v842
    %1120 = vmatprep.subr.bf16.mxu0 0
    %1121 = vmatpush1.bf16.msra.mxu0 %v845
    %1122 = vmatprep.subr.bf16.mxu0 0
    %1123 = vmatpush1.bf16.msra.mxu0 %v848
    %1124 = vmatprep.subr.bf16.mxu0 0
    %1125 = vmatpush1.bf16.msra.mxu0 %v851
    %1126 = vmatprep.subr.bf16.mxu0 0
    %1127 = vmatpush1.bf16.msra.mxu0 %v854
    %1128 = vmatprep.subr.bf16.mxu0 0
    %1129 = vmatpush1.bf16.msra.mxu0 %v857
    %1130 = vmatprep.subr.bf16.mxu0 0
    %1131 = vmatpush1.bf16.msra.mxu0 %v860
    %1132 = vmatprep.subr.bf16.mxu0 0
    %1133 = vmatpush1.bf16.msra.mxu0 %v863
    %1134 = vmatprep.subr.bf16.mxu0 0
    %1135 = vmatpush1.bf16.msra.mxu0 %v866
    %1136 = vmatprep.subr.bf16.mxu0 0
    %1137 = vmatpush1.bf16.msra.mxu0 %v869
    %1138 = vmatprep.subr.bf16.mxu0 0
    %1139 = vmatpush1.bf16.msra.mxu0 %v872
    %1140 = vmatprep.subr.bf16.mxu0 0
    %1141 = vmatpush1.bf16.msra.mxu0 %v875
    %1142 = vmatprep.subr.bf16.mxu0 0
    %1143 = vmatpush1.bf16.msra.mxu0 %v878
    %1144 = vmatprep.subr.bf16.mxu0 0
    %1145 = vmatpush1.bf16.msra.mxu0 %v881
    %1146 = vmatprep.subr.bf16.mxu0 0
    %1147 = vmatpush1.bf16.msra.mxu0 %v884
    %1148 = vmatprep.subr.bf16.mxu0 0
    %1149 = vmatpush1.bf16.msra.mxu0 %v887
    %1150 = vmatprep.mubr.bf16.mxu0 %v372
    %1151 = vmatmul.mubr.bf16.gmra.mrb[0].mxu0 %v371
    %v1152 = vpop.f32.mrb[0].mxu0
    %v1153 = vadd.f32 %v516, %v1152
    %v1154 = vpop.f32.mrb[0].mxu0
    %v1155 = vpop.f32.mrb[0].mxu0
    %v1156 = vadd.f32 %v516, %v1155
    %v1157 = vpop.f32.mrb[0].mxu0
    %1158 = vdwg.mxu0
    %1159 = vmatprep.subr.bf16.mxu0 0
    %1160 = vmatpush1.bf16.msra.mxu0 %v890
    %1161 = vmatprep.subr.bf16.mxu0 0
    %1162 = vmatpush1.bf16.msra.mxu0 %v893
    %1163 = vmatprep.subr.bf16.mxu0 0
    %1164 = vmatpush1.bf16.msra.mxu0 %v896
    %1165 = vmatprep.subr.bf16.mxu0 0
    %1166 = vmatpush1.bf16.msra.mxu0 %v899
    %1167 = vmatprep.subr.bf16.mxu0 0
    %1168 = vmatpush1.bf16.msra.mxu0 %v902
    %1169 = vmatprep.subr.bf16.mxu0 0
    %1170 = vmatpush1.bf16.msra.mxu0 %v905
    %1171 = vmatprep.subr.bf16.mxu0 0
    %1172 = vmatpush1.bf16.msra.mxu0 %v908
    %1173 = vmatprep.subr.bf16.mxu0 0
    %1174 = vmatpush1.bf16.msra.mxu0 %v911
    %1175 = vmatprep.subr.bf16.mxu0 0
    %1176 = vmatpush1.bf16.msra.mxu0 %v914
    %1177 = vmatprep.subr.bf16.mxu0 0
    %1178 = vmatpush1.bf16.msra.mxu0 %v917
    %1179 = vmatprep.subr.bf16.mxu0 0
    %1180 = vmatpush1.bf16.msra.mxu0 %v920
    %1181 = vmatprep.subr.bf16.mxu0 0
    %1182 = vmatpush1.bf16.msra.mxu0 %v923
    %1183 = vmatprep.subr.bf16.mxu0 0
    %1184 = vmatpush1.bf16.msra.mxu0 %v926
    %1185 = vmatprep.subr.bf16.mxu0 0
    %1186 = vmatpush1.bf16.msra.mxu0 %v929
    %1187 = vmatprep.subr.bf16.mxu0 0
    %1188 = vmatpush1.bf16.msra.mxu0 %v932
    %1189 = vmatprep.subr.bf16.mxu0 0
    %1190 = vmatpush1.bf16.msra.mxu0 %v935
    %1191 = vmatprep.mubr.bf16.mxu0 %v374
    %1192 = vmatmul.mubr.bf16.gmra.mrb[0].mxu0 %v373
    %v1193 = vpop.f32.mrb[0].mxu0
    %v1194 = vadd.f32 %v1153, %v1193
    %v1195 = vpop.f32.mrb[0].mxu0
    %v1196 = vpop.f32.mrb[0].mxu0
    %v1197 = vadd.f32 %v1156, %v1196
    %v1198 = vpop.f32.mrb[0].mxu0
    %1199 = vdwg.mxu0
    %s1200 = scalar_lea.vmem %s4, 1
    %v1201 = vld [vmem:[%s1200] ss:$4 sm:$0x7]
    %s1202 = scalar_lea.vmem %s4, 2
    %v1203 = vld [vmem:[%s1202] ss:$4 sm:$0x7]
    %v1204 = vadd.f32 %v1110, %v1112
    %v1205 = vadd.f32 %v1204, %v1194
    %1206 = vadd.xlane.f32.xlu0 %v1205
    %v1207 = vpop.xlane.xlu0 %1206
    %v1208 = vadd.f32 %v1114, %v1116
    %v1209 = vadd.f32 %v1208, %v1197
    %1210 = vadd.xlane.f32.xlu0 %v1209
    %v1211 = vpop.xlane.xlu0 %1210
    %v1212 = vmul.f32 %v1110, %v1110
    %v1213 = vmul.f32 %v1112, %v1112
    %v1214 = vmul.f32 %v1194, %v1194
    %v1215 = vmul.f32 %v1114, %v1114
    %v1216 = vmul.f32 %v1116, %v1116
    %v1217 = vmul.f32 %v1197, %v1197
    %v1218 = vadd.f32 %v1212, %v1213
    %v1219 = vadd.f32 %v1218, %v1214
    %1220 = vadd.xlane.f32.xlu0 %v1219
    %v1221 = vpop.xlane.xlu0 %1220
    %v1222 = vadd.f32 %v1215, %v1216
    %v1223 = vadd.f32 %v1222, %v1217
    %1224 = vadd.xlane.f32.xlu0 %v1223
    %v1225 = vpop.xlane.xlu0 %1224
    %v1226 = vmul.f32 %v1207, 0.0033333334
    %v1227 = vmul.f32 %v1211, 0.0033333334
    %v1228 = vmul.f32 %v1221, 0.0033333334
    %v1229 = vmul.f32 %v1225, 0.0033333334
    %v1230 = vmul.f32 %v1226, %v1226
    %v1231 = vmul.f32 %v1227, %v1227
    %v1232 = vsub.f32 %v1228, %v1230
    %v1233 = vsub.f32 %v1229, %v1231
    %v1234 = vadd.f32 %v1232, 1e-05
    %v1235 = vadd.f32 %v1233, 1e-05
    %v1236 = vrsqrt.pop %v1234
    %v1237 = vrsqrt.pop %v1235
    %v1238 = vsub.f32 %v1110, %v1226
    %v1239 = vsub.f32 %v1112, %v1226
    %v1240 = vsub.f32 %v1194, %v1226
    %v1241 = vsub.f32 %v1114, %v1227
    %v1242 = vsub.f32 %v1116, %v1227
    %v1243 = vsub.f32 %v1197, %v1227
    %v1244 = vmul.f32 %v1238, %v1236
    %v1245 = vmul.f32 %v1239, %v1236
    %v1246 = vmul.f32 %v1240, %v1236
    %v1247 = vmul.f32 %v1241, %v1237
    %v1248 = vmul.f32 %v1242, %v1237
    %v1249 = vmul.f32 %v1243, %v1237
    %v1251 = vlaneseq
    %v1252 = vshrl.u32 %v1251, 7
    %v1253 = vsub.s32 0, %v1252
    %v1254 = vrot.slane %v1201, %v1253
    %v1255 = vlaneseq
    %v1256 = vshrl.u32 %v1255, 7
    %v1257 = vsub.s32 1, %v1256
    %v1258 = vrot.slane %v1201, %v1257
    %v1259 = vlaneseq
    %v1260 = vshrl.u32 %v1259, 7
    %v1261 = vsub.s32 2, %v1260
    %v1262 = vrot.slane %v1201, %v1261
    %v1266 = vmul.f32 %v1244, %v1254
    %v1267 = vmul.f32 %v1245, %v1258
    %v1268 = vmul.f32 %v1246, %v1262
    %v1269 = vmul.f32 %v1247, %v1254
    %v1270 = vmul.f32 %v1248, %v1258
    %v1271 = vmul.f32 %v1249, %v1262
    %v1273 = vlaneseq
    %v1274 = vshrl.u32 %v1273, 7
    %v1275 = vsub.s32 0, %v1274
    %v1276 = vrot.slane %v1203, %v1275
    %v1277 = vlaneseq
    %v1278 = vshrl.u32 %v1277, 7
    %v1279 = vsub.s32 1, %v1278
    %v1280 = vrot.slane %v1203, %v1279
    %v1281 = vlaneseq
    %v1282 = vshrl.u32 %v1281, 7
    %v1283 = vsub.s32 2, %v1282
    %v1284 = vrot.slane %v1203, %v1283
    %v1288 = vadd.f32 %v1266, %v1276
    %v1289 = vadd.f32 %v1267, %v1280
    %v1290 = vadd.f32 %v1268, %v1284
    %v1291 = vadd.f32 %v1269, %v1276
    %v1292 = vadd.f32 %v1270, %v1280
    %v1293 = vadd.f32 %v1271, %v1284
    %v1294 = vmax.f32 %v1288, 0.0
    %v1295 = vmax.f32 %v1289, 0.0
    %v1296 = vmax.f32 %v1290, 0.0
    %v1297 = vmax.f32 %v1291, 0.0
    %v1298 = vmax.f32 %v1292, 0.0
    %v1299 = vmax.f32 %v1293, 0.0
    %v1300 = vpack.c.bf16 %v1297, %v1294
    %v1301 = vpack.c.bf16 %v1298, %v1295
    %v1302 = vpack.c.bf16 %v1299, %v1296
    %v1303 = vld [vmem:[#allocation10] sm:$0xf]
    %v1304 = vld [vmem:[#allocation10 + $0x4] sm:$0xf]
    %v1305 = vld [vmem:[#allocation10 + $0x8] sm:$0xf]
    %v1306 = vld [vmem:[#allocation10 + $0xc] sm:$0xf]
    %v1307 = vld [vmem:[#allocation10 + $0x10] sm:$0xf]
    %v1308 = vld [vmem:[#allocation10 + $0x14] sm:$0xf]
    %v1309 = vld [vmem:[#allocation10 + $0x18] sm:$0xf]
    %v1310 = vld [vmem:[#allocation10 + $0x1c] sm:$0xf]
    %v1311 = vld [vmem:[#allocation10 + $0x20] sm:$0xf]
    %v1312 = vld [vmem:[#allocation10 + $0x24] sm:$0xf]
    %v1313 = vld [vmem:[#allocation10 + $0x28] sm:$0xf]
    %v1314 = vld [vmem:[#allocation10 + $0x2c] sm:$0xf]
    %v1315 = vld [vmem:[#allocation10 + $0x30] sm:$0xf]
    %v1316 = vld [vmem:[#allocation10 + $0x34] sm:$0xf]
    %v1317 = vld [vmem:[#allocation10 + $0x38] sm:$0xf]
    %v1318 = vld [vmem:[#allocation10 + $0x3c] sm:$0xf]
    %v1319 = vld [vmem:[#allocation10 + $0x40] sm:$0xf]
    %v1320 = vld [vmem:[#allocation10 + $0x44] sm:$0xf]
    %v1321 = vld [vmem:[#allocation10 + $0x48] sm:$0xf]
    %v1322 = vld [vmem:[#allocation10 + $0x4c] sm:$0xf]
    %v1323 = vld [vmem:[#allocation10 + $0x50] sm:$0xf]
    %v1324 = vld [vmem:[#allocation10 + $0x54] sm:$0xf]
    %v1325 = vld [vmem:[#allocation10 + $0x58] sm:$0xf]
    %v1326 = vld [vmem:[#allocation10 + $0x5c] sm:$0xf]
    %v1327 = vld [vmem:[#allocation10 + $0x60] sm:$0xf]
    %v1328 = vld [vmem:[#allocation10 + $0x64] sm:$0xf]
    %v1329 = vld [vmem:[#allocation10 + $0x68] sm:$0xf]
    %v1330 = vld [vmem:[#allocation10 + $0x6c] sm:$0xf]
    %v1331 = vld [vmem:[#allocation10 + $0x70] sm:$0xf]
    %v1332 = vld [vmem:[#allocation10 + $0x74] sm:$0xf]
    %v1333 = vld [vmem:[#allocation10 + $0x78] sm:$0xf]
    %v1334 = vld [vmem:[#allocation10 + $0x7c] sm:$0xf]
    %v1335 = vld [vmem:[#allocation10 + $0x80] sm:$0xf]
    %v1336 = vld [vmem:[#allocation10 + $0x84] sm:$0xf]
    %v1337 = vld [vmem:[#allocation10 + $0x88] sm:$0xf]
    %v1338 = vld [vmem:[#allocation10 + $0x8c] sm:$0xf]
    %v1339 = vld [vmem:[#allocation10 + $0x90] sm:$0xf]
    %v1340 = vld [vmem:[#allocation10 + $0x94] sm:$0xf]
    %v1341 = vld [vmem:[#allocation10 + $0x98] sm:$0xf]
    %v1342 = vld [vmem:[#allocation10 + $0x9c] sm:$0xf]
    %v1343 = vld [vmem:[#allocation10 + $0xa0] sm:$0xf]
    %v1344 = vld [vmem:[#allocation10 + $0xa4] sm:$0xf]
    %v1345 = vld [vmem:[#allocation10 + $0xa8] sm:$0xf]
    %v1346 = vld [vmem:[#allocation10 + $0xac] sm:$0xf]
    %v1347 = vld [vmem:[#allocation10 + $0xb0] sm:$0xf]
    %v1348 = vld [vmem:[#allocation10 + $0xb4] sm:$0xf]
    %v1349 = vld [vmem:[#allocation10 + $0xb8] sm:$0xf]
    %v1350 = vld [vmem:[#allocation10 + $0xbc] sm:$0xf]
    %v1351 = vld [vmem:[%s6] sm:$0x1]
    %v1353 = vlaneseq
    %v1354 = vshrl.u32 %v1353, 7
    %v1355 = vsub.s32 0, %v1354
    %v1356 = vrot.slane %v1351, %v1355
    %v1406 = vunpack.c.l.b16 %v1303
    %v1407 = vunpack.c.l.b16 %v1304
    %v1408 = vunpack.c.l.b16 %v1305
    %v1409 = vunpack.c.l.b16 %v1306
    %v1410 = vunpack.c.l.b16 %v1307
    %v1411 = vunpack.c.l.b16 %v1308
    %v1412 = vunpack.c.l.b16 %v1309
    %v1413 = vunpack.c.l.b16 %v1310
    %v1414 = vunpack.c.l.b16 %v1311
    %v1415 = vunpack.c.l.b16 %v1312
    %v1416 = vunpack.c.l.b16 %v1313
    %v1417 = vunpack.c.l.b16 %v1314
    %v1418 = vunpack.c.l.b16 %v1315
    %v1419 = vunpack.c.l.b16 %v1316
    %v1420 = vunpack.c.l.b16 %v1317
    %v1421 = vunpack.c.l.b16 %v1318
    %v1422 = vunpack.c.l.b16 %v1319
    %v1423 = vunpack.c.l.b16 %v1320
    %v1424 = vunpack.c.l.b16 %v1321
    %v1425 = vunpack.c.l.b16 %v1322
    %v1426 = vunpack.c.l.b16 %v1323
    %v1427 = vunpack.c.l.b16 %v1324
    %v1428 = vunpack.c.l.b16 %v1325
    %v1429 = vunpack.c.l.b16 %v1326
    %v1430 = vunpack.c.l.b16 %v1327
    %v1431 = vunpack.c.l.b16 %v1328
    %v1432 = vunpack.c.l.b16 %v1329
    %v1433 = vunpack.c.l.b16 %v1330
    %v1434 = vunpack.c.l.b16 %v1331
    %v1435 = vunpack.c.l.b16 %v1332
    %v1436 = vunpack.c.l.b16 %v1333
    %v1437 = vunpack.c.l.b16 %v1334
    %v1438 = vunpack.c.l.b16 %v1335
    %v1439 = vunpack.c.l.b16 %v1336
    %v1440 = vunpack.c.l.b16 %v1337
    %v1441 = vunpack.c.l.b16 %v1338
    %v1442 = vunpack.c.l.b16 %v1339
    %v1443 = vunpack.c.l.b16 %v1340
    %v1444 = vunpack.c.l.b16 %v1341
    %v1445 = vunpack.c.l.b16 %v1342
    %v1446 = vunpack.c.l.b16 %v1343
    %v1447 = vunpack.c.l.b16 %v1344
    %v1448 = vunpack.c.l.b16 %v1345
    %v1449 = vunpack.c.l.b16 %v1346
    %v1450 = vunpack.c.l.b16 %v1347
    %v1451 = vunpack.c.l.b16 %v1348
    %v1452 = vunpack.c.l.b16 %v1349
    %v1453 = vunpack.c.l.b16 %v1350
    %v1454 = vpack.c.b16 %v1407, %v1406
    %v1455 = vpack.c.b16 %v1409, %v1408
    %v1456 = vpack.c.b16 %v1411, %v1410
    %v1457 = vpack.c.b16 %v1413, %v1412
    %v1458 = vpack.c.b16 %v1415, %v1414
    %v1459 = vpack.c.b16 %v1417, %v1416
    %v1460 = vpack.c.b16 %v1419, %v1418
    %v1461 = vpack.c.b16 %v1421, %v1420
    %v1462 = vpack.c.b16 %v1423, %v1422
    %v1463 = vpack.c.b16 %v1425, %v1424
    %v1464 = vpack.c.b16 %v1427, %v1426
    %v1465 = vpack.c.b16 %v1429, %v1428
    %v1466 = vpack.c.b16 %v1431, %v1430
    %v1467 = vpack.c.b16 %v1433, %v1432
    %v1468 = vpack.c.b16 %v1435, %v1434
    %v1469 = vpack.c.b16 %v1437, %v1436
    %v1470 = vpack.c.b16 %v1439, %v1438
    %v1471 = vpack.c.b16 %v1441, %v1440
    %v1472 = vpack.c.b16 %v1443, %v1442
    %v1473 = vpack.c.b16 %v1445, %v1444
    %v1474 = vpack.c.b16 %v1447, %v1446
    %v1475 = vpack.c.b16 %v1449, %v1448
    %v1476 = vpack.c.b16 %v1451, %v1450
    %v1477 = vpack.c.b16 %v1453, %v1452
    %1502 = vmatprep.subr.bf16.mxu0 0
    %1503 = vmatpush1.bf16.msra.mxu0 %v1454
    %1504 = vmatprep.subr.bf16.mxu0 0
    %1505 = vmatpush1.bf16.msra.mxu0 %v1455
    %1506 = vmatprep.subr.bf16.mxu0 0
    %1507 = vmatpush1.bf16.msra.mxu0 %v1456
    %1508 = vmatprep.subr.bf16.mxu0 0
    %1509 = vmatpush1.bf16.msra.mxu0 %v1457
    %1510 = vmatprep.subr.bf16.mxu0 0
    %1511 = vmatpush1.bf16.msra.mxu0 %v1458
    %1512 = vmatprep.subr.bf16.mxu0 0
    %1513 = vmatpush1.bf16.msra.mxu0 %v1459
    %1514 = vmatprep.subr.bf16.mxu0 0
    %1515 = vmatpush1.bf16.msra.mxu0 %v1460
    %1516 = vmatprep.subr.bf16.mxu0 0
    %1517 = vmatpush1.bf16.msra.mxu0 %v1461
    %1518 = vmatprep.subr.bf16.mxu0 0
    %1519 = vmatpush1.bf16.msra.mxu0 %v1462
    %1520 = vmatprep.subr.bf16.mxu0 0
    %1521 = vmatpush1.bf16.msra.mxu0 %v1463
    %1522 = vmatprep.subr.bf16.mxu0 0
    %1523 = vmatpush1.bf16.msra.mxu0 %v1464
    %1524 = vmatprep.subr.bf16.mxu0 0
    %1525 = vmatpush1.bf16.msra.mxu0 %v1465
    %1526 = vmatprep.subr.bf16.mxu0 0
    %1527 = vmatpush1.bf16.msra.mxu0 %v1466
    %1528 = vmatprep.subr.bf16.mxu0 0
    %1529 = vmatpush1.bf16.msra.mxu0 %v1467
    %1530 = vmatprep.subr.bf16.mxu0 0
    %1531 = vmatpush1.bf16.msra.mxu0 %v1468
    %1532 = vmatprep.subr.bf16.mxu0 0
    %1533 = vmatpush1.bf16.msra.mxu0 %v1469
    %1534 = vmatprep.mubr.bf16.mxu0 %v1301
    %1535 = vmatmul.mubr.bf16.gmra.mrb[0].mxu0 %v1300
    %v1536 = vpop.f32.mrb[0].mxu0
    %v1537 = vadd.f32 %v1356, %v1536
    %v1538 = vpop.f32.mrb[0].mxu0
    %v1539 = vpop.f32.mrb[0].mxu0
    %v1540 = vadd.f32 %v1356, %v1539
    %v1541 = vpop.f32.mrb[0].mxu0
    %1542 = vdwg.mxu0
    %1543 = vmatprep.subr.bf16.mxu0 0
    %1544 = vmatpush1.bf16.msra.mxu0 %v1470
    %1545 = vmatprep.subr.bf16.mxu0 0
    %1546 = vmatpush1.bf16.msra.mxu0 %v1471
    %1547 = vmatprep.subr.bf16.mxu0 0
    %1548 = vmatpush1.bf16.msra.mxu0 %v1472
    %1549 = vmatprep.subr.bf16.mxu0 0
    %1550 = vmatpush1.bf16.msra.mxu0 %v1473
    %1551 = vmatprep.subr.bf16.mxu0 0
    %1552 = vmatpush1.bf16.msra.mxu0 %v1474
    %1553 = vmatprep.subr.bf16.mxu0 0
    %1554 = vmatpush1.bf16.msra.mxu0 %v1475
    %1555 = vmatprep.subr.bf16.mxu0 0
    %1556 = vmatpush1.bf16.msra.mxu0 %v1476
    %1557 = vmatprep.subr.bf16.mxu0 0
    %1558 = vmatpush1.bf16.msra.mxu0 %v1477
    %1559 = vmatprep.subr.bf16.mxu0 0
    %1560 = vmatpush1.bf16.msra.mxu0 0
    %1561 = vmatprep.subr.bf16.mxu0 0
    %1562 = vmatpush1.bf16.msra.mxu0 0
    %1563 = vmatprep.subr.bf16.mxu0 0
    %1564 = vmatpush1.bf16.msra.mxu0 0
    %1565 = vmatprep.subr.bf16.mxu0 0
    %1566 = vmatpush1.bf16.msra.mxu0 0
    %1567 = vmatprep.subr.bf16.mxu0 0
    %1568 = vmatpush1.bf16.msra.mxu0 0
    %1569 = vmatprep.subr.bf16.mxu0 0
    %1570 = vmatpush1.bf16.msra.mxu0 0
    %1571 = vmatprep.subr.bf16.mxu0 0
    %1572 = vmatpush1.bf16.msra.mxu0 0
    %1573 = vmatprep.subr.bf16.mxu0 0
    %1574 = vmatpush1.bf16.msra.mxu0 0
    %1575 = vmatprep.mubr.bf16.mxu0 0
    %1576 = vmatmul.mubr.bf16.gmra.mrb[0].mxu0 %v1302
    %v1577 = vpop.f32.mrb[0].mxu0
    %v1578 = vadd.f32 %v1537, %v1577
    %v1579 = vpop.f32.mrb[0].mxu0
    %v1580 = vpop.f32.mrb[0].mxu0
    %v1581 = vadd.f32 %v1540, %v1580
    %v1582 = vpop.f32.mrb[0].mxu0
    %1583 = vdwg.mxu0
    %v1584 = vtanh.pop %v1578
    %v1585 = vtanh.pop %v1581
    %1586 = vst [vmem:[#allocation11] sm:$0xff] %v1584
    %1587 = vst [vmem:[#allocation11 + $0x8] sm:$0xff] %v1585
    // Predicated region
    $region50: #{tpu_custom_call.1} parent=1 // pred_check
      _
    $region51: #{tpu_custom_call.1} parent=1 // pred_check_branch
      %1589 = sbr.rel (0) target = $region53
    $region52: #{tpu_custom_call.1} parent=1 // pred_region
      %s1591 = ssub.s32 256, 256
      %1592 = vsyncadd [#allocation4], %s1591
      %s1593 = sshll.u32 [#allocation11], 4
      %s1594 = int_to_ptr.vmem [resolvable:$true] %s1593
      %1599 = dma.vmem_to_hbm [thread:$0]  %s1594, 256, %s7, [#allocation4], 128, 128, 8
    $region53: #{tpu_custom_call.1} parent=1 // pred_fallthru
      _
    // Predicated region
    $region54: #{tpu_custom_call.1} parent=1 // pred_check
      _
    $region55: #{tpu_custom_call.1} parent=1 // pred_check_branch
      %1601 = sbr.rel (0) target = $region57
    $region56: #{tpu_custom_call.1} parent=1 // pred_region
      %1602 = dma.done [#allocation4], 256
    $region57: #{tpu_custom_call.1} parent=1 // pred_fallthru
      _
    %1603 = vsyncpa [#allocation3], 1
    %1604 = vsyncpa [#allocation6], 1
    %1605 = vsyncpa [#allocation9], 1
    %1606 = vsyncpa [#allocation4], 1

</llo_original>
